<compile_context>
chip_gen: v5e
topology: v5e:2x2
jax: 0.10.0
libtpu: 0.0.40
codegen_flags: <defaults>
</compile_context>

<pallas_src>
import functools

import jax
import jax.numpy as jnp
import numpy as np
from jax import lax
from jax.experimental import pallas as pl
from jax.experimental.pallas import tpu as pltpu


# --------------------------------------------------------------------------- #
# Kernel 1: embedding row gather (manual DMA from HBM) + GRU cell + attention.
# --------------------------------------------------------------------------- #
def _gru_attn_kernel(b_real,                     # static (closed over): real batch size
                     tgt_ref,                    # SMEM  [B_pad]        int32 token ids
                     emb_hbm,                    # HBM   [V, E]         f32 (pl.ANY)
                     h_ref,                      # VMEM  [B_pad, H2]    f32
                     enc_ref,                    # VMEM  [L, B_pad, H2] bf16
                     mask_ref,                   # VMEM  [L, B_pad]     int32
                     wi_ref, wh_ref,             # VMEM  [E,3H2],[H2,3H2] bf16
                     brz_ref, bin_ref, bhn_ref,  # VMEM  f32 biases
                     hnew_ref, ctx_ref,          # VMEM  [B_pad, H2]    f32 outputs
                     x_buf, dma_sem):            # scratch: [B_pad, E] f32, DMA sems (B_pad,)
    B_pad, _ = x_buf.shape
    H2 = h_ref.shape[1]

    # ---- embedding gather: B_pad small row DMAs from the HBM-resident table --
    copies = [
        pltpu.make_async_copy(
            emb_hbm.at[pl.ds(tgt_ref[i], 1), :],   # dynamic row index (SMEM scalar)
            x_buf.at[pl.ds(i, 1), :],
            dma_sem.at[i])
        for i in range(B_pad)                      # static trip count
    ]
    for c in copies:
        c.start()
    for c in copies:
        c.wait()

    x = x_buf[...].astype(wi_ref.dtype)            # [B, E]  bf16 MXU operand
    h = h_ref[...]                                 # [B, H2] f32

    # ---- fused GRU gate matmuls (PyTorch gate order r, z, n) -----------------
    gi = jnp.dot(x, wi_ref[...], preferred_element_type=jnp.float32)          # [B, 3*H2]
    gh = jnp.dot(h.astype(wh_ref.dtype), wh_ref[...],
                 preferred_element_type=jnp.float32)                          # [B, 3*H2]

    rz = jax.nn.sigmoid(gi[:, :2 * H2] + gh[:, :2 * H2] + brz_ref[...])       # f32 VPU/EUP
    r = rz[:, :H2]
    z = rz[:, H2:]
    n = jnp.tanh(gi[:, 2 * H2:] + bin_ref[...] + r * (gh[:, 2 * H2:] + bhn_ref[...]))
    h_new = (1.0 - z) * n + z * h                                             # [B, H2]

    # ---- attention on the native [L, B, H2] layout (enc streamed as bf16) ----
    enc = enc_ref[...].astype(jnp.float32)                                    # [L, B, H2]
    align = jnp.sum(enc * h_new[None, :, :], axis=-1)                         # [L, B]
    align = jnp.where(mask_ref[...] == 0, jnp.float32(-1e10), align)

    # softmax over the *batch* dim (torch dim=0) == last axis in this layout
    m = jnp.max(align, axis=1, keepdims=True)
    e = jnp.exp(align - m)
    # exclude padded batch rows *exactly* so real rows match the unpadded math
    valid = (lax.broadcasted_iota(jnp.int32, (1, B_pad), 1) < b_real).astype(jnp.float32)
    e = e * valid
    s = jnp.sum(e, axis=1, keepdims=True)
    attn = e * pl.reciprocal(s, approx=True)                                  # [L, B]

    context = jnp.sum(attn[:, :, None] * enc, axis=0)                         # [B, H2]

    hnew_ref[...] = h_new
    ctx_ref[...] = context


# --------------------------------------------------------------------------- #
# Kernel 2: output projection, tiled over the vocab axis (split weights, no
# lane concat of [h_new | context]).
# --------------------------------------------------------------------------- #
def _proj_kernel(h_ref, c_ref, wlh_ref, wlc_ref, blin_ref, dec_ref):
    dec = (jnp.dot(h_ref[...].astype(wlh_ref.dtype), wlh_ref[...],
                   preferred_element_type=jnp.float32)
           + jnp.dot(c_ref[...].astype(wlc_ref.dtype), wlc_ref[...],
                     preferred_element_type=jnp.float32)
           + blin_ref[...])
    dec_ref[...] = dec.astype(dec_ref.dtype)


# --------------------------------------------------------------------------- #
# Wrapper
# --------------------------------------------------------------------------- #
def decoder_forward(target, prev_state, enc_outputs, mask, kp, *, tile_v=128):
    """target: [B] int, prev_state: [1,B,H2] f32, enc_outputs: [L,B,H2] f32,
    mask: [B,L] int. Returns (dec_output [B,V], state [1,B,H2])."""
    B = target.shape[0]
    L = enc_outputs.shape[0]
    H2 = prev_state.shape[2]
    E = kp["emb"].shape[1]
    V = kp["b_lin"].shape[1]

    # pad batch to the f32 sublane granularity (8); padded rows are excluded
    # from the batch-dim softmax inside the kernel and sliced off afterwards.
    B_pad = ((B + 7) // 8) * 8
    pb = B_pad - B
    tgt_pad = jnp.pad(target.astype(jnp.int32), (0, pb))
    h_pad = jnp.pad(prev_state[0], ((0, pb), (0, 0)))
    enc_pad = jnp.pad(enc_outputs, ((0, 0), (0, pb), (0, 0))).astype(jnp.bfloat16)
    mask_lb = jnp.pad(jnp.transpose(mask.astype(jnp.int32)), ((0, 0), (0, pb)))

    vmem = lambda: pl.BlockSpec(memory_space=pltpu.MemorySpace.VMEM)

    # ---- kernel 1: gather + GRU + attention -> (h_new, context) --------------
    flops1 = 2 * B_pad * (E + H2) * 3 * H2 + 4 * L * B_pad * H2
    bytes1 = (B_pad * E * 4 + (E + H2) * 3 * H2 * 2 + 4 * H2 * 4
              + L * B_pad * H2 * 2 + L * B_pad * 4 + 3 * B_pad * H2 * 4)
    h_new, context = pl.pallas_call(
        functools.partial(_gru_attn_kernel, B),
        out_shape=(jax.ShapeDtypeStruct((B_pad, H2), jnp.float32),
                   jax.ShapeDtypeStruct((B_pad, H2), jnp.float32)),
        in_specs=[
            pl.BlockSpec(memory_space=pltpu.MemorySpace.SMEM),   # token ids -> scalar path
            pl.BlockSpec(memory_space=pl.ANY),                   # embedding table stays in HBM
            vmem(), vmem(), vmem(),                              # h_prev, enc (bf16), mask
            vmem(), vmem(),                                      # w_i, w_h
            vmem(), vmem(), vmem(),                              # b_rz, b_in, b_hn
        ],
        out_specs=(vmem(), vmem()),
        scratch_shapes=[pltpu.VMEM((B_pad, E), jnp.float32),
                        pltpu.SemaphoreType.DMA((B_pad,))],
        cost_estimate=pl.CostEstimate(flops=flops1,
                                      transcendentals=3 * B_pad * H2 + L * B_pad,
                                      bytes_accessed=bytes1),
    )(tgt_pad, kp["emb"], h_pad, enc_pad, mask_lb,
      kp["w_i"], kp["w_h"], kp["b_rz"], kp["b_in"], kp["b_hn"])

    # ---- kernel 2: vocab-tiled output projection ------------------------------
    tile_v = min(tile_v, V)
    assert V % tile_v == 0, "demo assumes V is a multiple of tile_v"
    nv = V // tile_v
    flops2 = 2 * B_pad * 2 * H2 * V
    bytes2 = 2 * H2 * V * 2 + V * 4 + 2 * B_pad * H2 * 4 + B_pad * V * 4
    dec_pad = pl.pallas_call(
        _proj_kernel,
        out_shape=jax.ShapeDtypeStruct((B_pad, V), jnp.float32),
        grid_spec=pltpu.PrefetchScalarGridSpec(
            num_scalar_prefetch=0,
            grid=(nv,),
            in_specs=[
                pl.BlockSpec((B_pad, H2), lambda j: (0, 0)),
                pl.BlockSpec((B_pad, H2), lambda j: (0, 0)),
                pl.BlockSpec((H2, tile_v), lambda j: (0, j)),
                pl.BlockSpec((H2, tile_v), lambda j: (0, j)),
                pl.BlockSpec((1, tile_v), lambda j: (0, j)),
            ],
            out_specs=pl.BlockSpec((B_pad, tile_v), lambda j: (0, j))),
        compiler_params=pltpu.CompilerParams(
            dimension_semantics=("parallel",),        # v7x: vocab tiles split across 2 TCs
            vmem_limit_bytes=64 * 1024 * 1024),       # lift the 16/32 MiB scoped defaults
        cost_estimate=pl.CostEstimate(flops=flops2, transcendentals=0,
                                      bytes_accessed=bytes2),
    )(h_new, context, kp["w_lin_h"], kp["w_lin_c"], kp["b_lin"])

    return dec_pad[:B], h_new[:B][None]


def prepare_kernel_params(p):
    """One-time param prep: fuse gate weights, pre-sum r/z biases, cast matmul
    operands to bf16 (f32 accumulation happens inside the kernel).  The
    embedding table stays f32 and HBM-resident (gathered row-by-row)."""
    bf16 = jnp.bfloat16
    H2 = p["w_hr"].shape[0]
    return {
        "emb": p["embedding"],
        "w_i": jnp.concatenate([p["w_ir"], p["w_iz"], p["w_in"]], axis=1).astype(bf16),
        "w_h": jnp.concatenate([p["w_hr"], p["w_hz"], p["w_hn"]], axis=1).astype(bf16),
        "b_rz": (p["b_ih"][0:2] + p["b_hh"][0:2]).reshape(1, 2 * H2),
        "b_in": p["b_ih"][2:3],
        "b_hn": p["b_hh"][2:3],
        "w_lin_h": p["w_lin"][:H2].astype(bf16),
        "w_lin_c": p["w_lin"][H2:].astype(bf16),
        "b_lin": p["b_lin"],
    }


def ref_forward(target, prev_state, enc_outputs, mask, kp):
    """Pure-JAX reference mirroring the PyTorch forward (same bf16 weight /
    activation casts as the kernel so the comparison is apples-to-apples)."""
    f32, bf16 = jnp.float32, jnp.bfloat16
    x = kp["emb"][target].astype(bf16)                   # [B, E]
    h = prev_state[0]                                    # [B, H2] f32
    H2 = h.shape[1]
    gi = jnp.dot(x, kp["w_i"], preferred_element_type=f32)
    gh = jnp.dot(h.astype(bf16), kp["w_h"], preferred_element_type=f32)
    rz = jax.nn.sigmoid(gi[:, :2 * H2] + gh[:, :2 * H2] + kp["b_rz"])
    r, z = rz[:, :H2], rz[:, H2:]
    n = jnp.tanh(gi[:, 2 * H2:] + kp["b_in"] + r * (gh[:, 2 * H2:] + kp["b_hn"]))
    h_new = (1.0 - z) * n + z * h
    enc = enc_outputs.astype(bf16).astype(f32)           # mirror bf16 streaming of enc
    encT = jnp.transpose(enc, (1, 0, 2))                 # [B, L, H2]
    align = jnp.einsum("blh,bh->bl", encT, h_new)
    align = jnp.where(mask == 0, -1e10, align)
    attn = jax.nn.softmax(align, axis=0)                 # softmax over batch dim, as in torch
    context = jnp.einsum("bl,blh->bh", attn, encT)
    dec = (jnp.dot(h_new.astype(bf16), kp["w_lin_h"], preferred_element_type=f32)
           + jnp.dot(context.astype(bf16), kp["w_lin_c"], preferred_element_type=f32)
           + kp["b_lin"])
    return dec, h_new[None]


def make_params(key, vocab_size, embed_size, hidden_size):
    H2 = hidden_size * 2
    ks = jax.random.split(key, 12)
    s = 0.1
    return {
        "embedding": jax.random.normal(ks[0], (vocab_size, embed_size), jnp.float32) * s,
        "w_ir": jax.random.normal(ks[1], (embed_size, H2), jnp.float32) * s,
        "w_iz": jax.random.normal(ks[2], (embed_size, H2), jnp.float32) * s,
        "w_in": jax.random.normal(ks[3], (embed_size, H2), jnp.float32) * s,
        "w_hr": jax.random.normal(ks[4], (H2, H2), jnp.float32) * s,
        "w_hz": jax.random.normal(ks[5], (H2, H2), jnp.float32) * s,
        "w_hn": jax.random.normal(ks[6], (H2, H2), jnp.float32) * s,
        "b_ih": jax.random.normal(ks[7], (3, H2), jnp.float32) * s,
        "b_hh": jax.random.normal(ks[8], (3, H2), jnp.float32) * s,
        "w_lin": jax.random.normal(ks[9], (2 * H2, vocab_size), jnp.float32) * s,
        "b_lin": jax.random.normal(ks[10], (1, vocab_size), jnp.float32) * s,
    }


if __name__ == "__main__":
    # hidden_size=64 -> H2=128 (lane-aligned gate slices); V=256 -> 2 vocab tiles.
    vocab_size, embed_size, hidden_size = 256, 32, 64
    B, L = 4, 8
    H2 = hidden_size * 2

    key = jax.random.PRNGKey(0)
    kpar, kt, kh, ke, km = jax.random.split(key, 5)

    params = make_params(kpar, vocab_size, embed_size, hidden_size)
    kparams = prepare_kernel_params(params)

    target = jax.random.randint(kt, (B,), 0, vocab_size, jnp.int32)
    prev_state = jax.random.normal(kh, (1, B, H2), jnp.float32) * 0.1
    enc_outputs = jax.random.normal(ke, (L, B, H2), jnp.float32) * 0.1
    mask = (jax.random.uniform(km, (B, L)) > 0.2).astype(jnp.int32)

    dec, state = decoder_forward(target, prev_state, enc_outputs, mask, kparams)
    dec, state = jax.block_until_ready(dec), jax.block_until_ready(state)

    dec_ref, state_ref = ref_forward(target, prev_state, enc_outputs, mask, kparams)
    np.testing.assert_allclose(np.asarray(dec), np.asarray(dec_ref), rtol=5e-3, atol=5e-3)
    np.testing.assert_allclose(np.asarray(state), np.asarray(state_ref), rtol=5e-3, atol=5e-3)

    assert dec.shape == (B, vocab_size) and state.shape == (1, B, H2)
    print("KERNEL_OK")
</pallas_src>

<mosaic_0001>
module attributes {stable_mosaic.version = 11 : i64} {
  func.func @_gru_attn_kernel(%arg0: memref<8xi32, #tpu.memory_space<smem>>, %arg1: memref<256x32xf32, #tpu.memory_space<any>>, %arg2: memref<8x128xf32, #tpu.memory_space<vmem>>, %arg3: memref<8x8x128xbf16, #tpu.memory_space<vmem>>, %arg4: memref<8x8xi32, #tpu.memory_space<vmem>>, %arg5: memref<32x384xbf16, #tpu.memory_space<vmem>>, %arg6: memref<128x384xbf16, #tpu.memory_space<vmem>>, %arg7: memref<1x256xf32, #tpu.memory_space<vmem>>, %arg8: memref<1x128xf32, #tpu.memory_space<vmem>>, %arg9: memref<1x128xf32, #tpu.memory_space<vmem>>, %arg10: memref<8x128xf32, #tpu.memory_space<vmem>>, %arg11: memref<8x128xf32, #tpu.memory_space<vmem>>, %arg12: memref<8x32xf32, #tpu.memory_space<vmem>>, %arg13: memref<8x!tpu.dma_semaphore, #tpu.memory_space<semaphore_mem>>) attributes {dimension_semantics = [], scalar_prefetch = 0 : i64, scratch_operands = 2 : i64, tpu.core_type = #tpu.core_type<tc>} {
    %c0 = arith.constant 0 : index
    %0 = memref.load %arg0[%c0] : memref<8xi32, #tpu.memory_space<smem>>
    %c1 = arith.constant 1 : index
    %1 = memref.load %arg0[%c1] : memref<8xi32, #tpu.memory_space<smem>>
    %c2 = arith.constant 2 : index
    %2 = memref.load %arg0[%c2] : memref<8xi32, #tpu.memory_space<smem>>
    %c3 = arith.constant 3 : index
    %3 = memref.load %arg0[%c3] : memref<8xi32, #tpu.memory_space<smem>>
    %c4 = arith.constant 4 : index
    %4 = memref.load %arg0[%c4] : memref<8xi32, #tpu.memory_space<smem>>
    %c5 = arith.constant 5 : index
    %5 = memref.load %arg0[%c5] : memref<8xi32, #tpu.memory_space<smem>>
    %c6 = arith.constant 6 : index
    %6 = memref.load %arg0[%c6] : memref<8xi32, #tpu.memory_space<smem>>
    %c7 = arith.constant 7 : index
    %7 = memref.load %arg0[%c7] : memref<8xi32, #tpu.memory_space<smem>>
    %c0_i32 = arith.constant 0 : i32
    %c0_i32_0 = arith.constant 0 : i32
    %8 = tpu.memref_slice %arg1[%0, %c0_i32_0] : memref<256x32xf32, #tpu.memory_space<any>> -> memref<1x32xf32, #tpu.memory_space<any>>
    %c0_i32_1 = arith.constant 0 : i32
    %c0_i32_2 = arith.constant 0 : i32
    %9 = tpu.memref_slice %arg12[%c0_i32_1, %c0_i32_2] : memref<8x32xf32, #tpu.memory_space<vmem>> -> memref<1x32xf32, #tpu.memory_space<vmem>>
    %10 = tpu.memref_slice %arg13[%c0_i32] : memref<8x!tpu.dma_semaphore, #tpu.memory_space<semaphore_mem>> -> memref<1x!tpu.dma_semaphore, #tpu.memory_space<semaphore_mem>>
    %11 = tpu.memref_squeeze %10 : memref<1x!tpu.dma_semaphore, #tpu.memory_space<semaphore_mem>> -> memref<!tpu.dma_semaphore, #tpu.memory_space<semaphore_mem>>
    tpu.enqueue_dma source(%8 : memref<1x32xf32, #tpu.memory_space<any>>) target(%9 : memref<1x32xf32, #tpu.memory_space<vmem>>) target_semaphore(%11 : memref<!tpu.dma_semaphore, #tpu.memory_space<semaphore_mem>>)
    %c1_i32 = arith.constant 1 : i32
    %c0_i32_3 = arith.constant 0 : i32
    %12 = tpu.memref_slice %arg1[%1, %c0_i32_3] : memref<256x32xf32, #tpu.memory_space<any>> -> memref<1x32xf32, #tpu.memory_space<any>>
    %c1_i32_4 = arith.constant 1 : i32
    %c0_i32_5 = arith.constant 0 : i32
    %13 = tpu.memref_slice %arg12[%c1_i32_4, %c0_i32_5] : memref<8x32xf32, #tpu.memory_space<vmem>> -> memref<1x32xf32, #tpu.memory_space<vmem>>
    %14 = tpu.memref_slice %arg13[%c1_i32] : memref<8x!tpu.dma_semaphore, #tpu.memory_space<semaphore_mem>> -> memref<1x!tpu.dma_semaphore, #tpu.memory_space<semaphore_mem>>
    %15 = tpu.memref_squeeze %14 : memref<1x!tpu.dma_semaphore, #tpu.memory_space<semaphore_mem>> -> memref<!tpu.dma_semaphore, #tpu.memory_space<semaphore_mem>>
    tpu.enqueue_dma source(%12 : memref<1x32xf32, #tpu.memory_space<any>>) target(%13 : memref<1x32xf32, #tpu.memory_space<vmem>>) target_semaphore(%15 : memref<!tpu.dma_semaphore, #tpu.memory_space<semaphore_mem>>)
    %c2_i32 = arith.constant 2 : i32
    %c0_i32_6 = arith.constant 0 : i32
    %16 = tpu.memref_slice %arg1[%2, %c0_i32_6] : memref<256x32xf32, #tpu.memory_space<any>> -> memref<1x32xf32, #tpu.memory_space<any>>
    %c2_i32_7 = arith.constant 2 : i32
    %c0_i32_8 = arith.constant 0 : i32
    %17 = tpu.memref_slice %arg12[%c2_i32_7, %c0_i32_8] : memref<8x32xf32, #tpu.memory_space<vmem>> -> memref<1x32xf32, #tpu.memory_space<vmem>>
    %18 = tpu.memref_slice %arg13[%c2_i32] : memref<8x!tpu.dma_semaphore, #tpu.memory_space<semaphore_mem>> -> memref<1x!tpu.dma_semaphore, #tpu.memory_space<semaphore_mem>>
    %19 = tpu.memref_squeeze %18 : memref<1x!tpu.dma_semaphore, #tpu.memory_space<semaphore_mem>> -> memref<!tpu.dma_semaphore, #tpu.memory_space<semaphore_mem>>
    tpu.enqueue_dma source(%16 : memref<1x32xf32, #tpu.memory_space<any>>) target(%17 : memref<1x32xf32, #tpu.memory_space<vmem>>) target_semaphore(%19 : memref<!tpu.dma_semaphore, #tpu.memory_space<semaphore_mem>>)
    %c3_i32 = arith.constant 3 : i32
    %c0_i32_9 = arith.constant 0 : i32
    %20 = tpu.memref_slice %arg1[%3, %c0_i32_9] : memref<256x32xf32, #tpu.memory_space<any>> -> memref<1x32xf32, #tpu.memory_space<any>>
    %c3_i32_10 = arith.constant 3 : i32
    %c0_i32_11 = arith.constant 0 : i32
    %21 = tpu.memref_slice %arg12[%c3_i32_10, %c0_i32_11] : memref<8x32xf32, #tpu.memory_space<vmem>> -> memref<1x32xf32, #tpu.memory_space<vmem>>
    %22 = tpu.memref_slice %arg13[%c3_i32] : memref<8x!tpu.dma_semaphore, #tpu.memory_space<semaphore_mem>> -> memref<1x!tpu.dma_semaphore, #tpu.memory_space<semaphore_mem>>
    %23 = tpu.memref_squeeze %22 : memref<1x!tpu.dma_semaphore, #tpu.memory_space<semaphore_mem>> -> memref<!tpu.dma_semaphore, #tpu.memory_space<semaphore_mem>>
    tpu.enqueue_dma source(%20 : memref<1x32xf32, #tpu.memory_space<any>>) target(%21 : memref<1x32xf32, #tpu.memory_space<vmem>>) target_semaphore(%23 : memref<!tpu.dma_semaphore, #tpu.memory_space<semaphore_mem>>)
    %c4_i32 = arith.constant 4 : i32
    %c0_i32_12 = arith.constant 0 : i32
    %24 = tpu.memref_slice %arg1[%4, %c0_i32_12] : memref<256x32xf32, #tpu.memory_space<any>> -> memref<1x32xf32, #tpu.memory_space<any>>
    %c4_i32_13 = arith.constant 4 : i32
    %c0_i32_14 = arith.constant 0 : i32
    %25 = tpu.memref_slice %arg12[%c4_i32_13, %c0_i32_14] : memref<8x32xf32, #tpu.memory_space<vmem>> -> memref<1x32xf32, #tpu.memory_space<vmem>>
    %26 = tpu.memref_slice %arg13[%c4_i32] : memref<8x!tpu.dma_semaphore, #tpu.memory_space<semaphore_mem>> -> memref<1x!tpu.dma_semaphore, #tpu.memory_space<semaphore_mem>>
    %27 = tpu.memref_squeeze %26 : memref<1x!tpu.dma_semaphore, #tpu.memory_space<semaphore_mem>> -> memref<!tpu.dma_semaphore, #tpu.memory_space<semaphore_mem>>
    tpu.enqueue_dma source(%24 : memref<1x32xf32, #tpu.memory_space<any>>) target(%25 : memref<1x32xf32, #tpu.memory_space<vmem>>) target_semaphore(%27 : memref<!tpu.dma_semaphore, #tpu.memory_space<semaphore_mem>>)
    %c5_i32 = arith.constant 5 : i32
    %c0_i32_15 = arith.constant 0 : i32
    %28 = tpu.memref_slice %arg1[%5, %c0_i32_15] : memref<256x32xf32, #tpu.memory_space<any>> -> memref<1x32xf32, #tpu.memory_space<any>>
    %c5_i32_16 = arith.constant 5 : i32
    %c0_i32_17 = arith.constant 0 : i32
    %29 = tpu.memref_slice %arg12[%c5_i32_16, %c0_i32_17] : memref<8x32xf32, #tpu.memory_space<vmem>> -> memref<1x32xf32, #tpu.memory_space<vmem>>
    %30 = tpu.memref_slice %arg13[%c5_i32] : memref<8x!tpu.dma_semaphore, #tpu.memory_space<semaphore_mem>> -> memref<1x!tpu.dma_semaphore, #tpu.memory_space<semaphore_mem>>
    %31 = tpu.memref_squeeze %30 : memref<1x!tpu.dma_semaphore, #tpu.memory_space<semaphore_mem>> -> memref<!tpu.dma_semaphore, #tpu.memory_space<semaphore_mem>>
    tpu.enqueue_dma source(%28 : memref<1x32xf32, #tpu.memory_space<any>>) target(%29 : memref<1x32xf32, #tpu.memory_space<vmem>>) target_semaphore(%31 : memref<!tpu.dma_semaphore, #tpu.memory_space<semaphore_mem>>)
    %c6_i32 = arith.constant 6 : i32
    %c0_i32_18 = arith.constant 0 : i32
    %32 = tpu.memref_slice %arg1[%6, %c0_i32_18] : memref<256x32xf32, #tpu.memory_space<any>> -> memref<1x32xf32, #tpu.memory_space<any>>
    %c6_i32_19 = arith.constant 6 : i32
    %c0_i32_20 = arith.constant 0 : i32
    %33 = tpu.memref_slice %arg12[%c6_i32_19, %c0_i32_20] : memref<8x32xf32, #tpu.memory_space<vmem>> -> memref<1x32xf32, #tpu.memory_space<vmem>>
    %34 = tpu.memref_slice %arg13[%c6_i32] : memref<8x!tpu.dma_semaphore, #tpu.memory_space<semaphore_mem>> -> memref<1x!tpu.dma_semaphore, #tpu.memory_space<semaphore_mem>>
    %35 = tpu.memref_squeeze %34 : memref<1x!tpu.dma_semaphore, #tpu.memory_space<semaphore_mem>> -> memref<!tpu.dma_semaphore, #tpu.memory_space<semaphore_mem>>
    tpu.enqueue_dma source(%32 : memref<1x32xf32, #tpu.memory_space<any>>) target(%33 : memref<1x32xf32, #tpu.memory_space<vmem>>) target_semaphore(%35 : memref<!tpu.dma_semaphore, #tpu.memory_space<semaphore_mem>>)
    %c7_i32 = arith.constant 7 : i32
    %c0_i32_21 = arith.constant 0 : i32
    %36 = tpu.memref_slice %arg1[%7, %c0_i32_21] : memref<256x32xf32, #tpu.memory_space<any>> -> memref<1x32xf32, #tpu.memory_space<any>>
    %c7_i32_22 = arith.constant 7 : i32
    %c0_i32_23 = arith.constant 0 : i32
    %37 = tpu.memref_slice %arg12[%c7_i32_22, %c0_i32_23] : memref<8x32xf32, #tpu.memory_space<vmem>> -> memref<1x32xf32, #tpu.memory_space<vmem>>
    %38 = tpu.memref_slice %arg13[%c7_i32] : memref<8x!tpu.dma_semaphore, #tpu.memory_space<semaphore_mem>> -> memref<1x!tpu.dma_semaphore, #tpu.memory_space<semaphore_mem>>
    %39 = tpu.memref_squeeze %38 : memref<1x!tpu.dma_semaphore, #tpu.memory_space<semaphore_mem>> -> memref<!tpu.dma_semaphore, #tpu.memory_space<semaphore_mem>>
    tpu.enqueue_dma source(%36 : memref<1x32xf32, #tpu.memory_space<any>>) target(%37 : memref<1x32xf32, #tpu.memory_space<vmem>>) target_semaphore(%39 : memref<!tpu.dma_semaphore, #tpu.memory_space<semaphore_mem>>)
    %c0_i32_24 = arith.constant 0 : i32
    %c0_i32_25 = arith.constant 0 : i32
    %40 = tpu.memref_slice %arg1[%0, %c0_i32_25] : memref<256x32xf32, #tpu.memory_space<any>> -> memref<1x32xf32, #tpu.memory_space<any>>
    %c0_i32_26 = arith.constant 0 : i32
    %c0_i32_27 = arith.constant 0 : i32
    %41 = tpu.memref_slice %arg12[%c0_i32_26, %c0_i32_27] : memref<8x32xf32, #tpu.memory_space<vmem>> -> memref<1x32xf32, #tpu.memory_space<vmem>>
    %42 = tpu.memref_slice %arg13[%c0_i32_24] : memref<8x!tpu.dma_semaphore, #tpu.memory_space<semaphore_mem>> -> memref<1x!tpu.dma_semaphore, #tpu.memory_space<semaphore_mem>>
    %43 = tpu.memref_squeeze %42 : memref<1x!tpu.dma_semaphore, #tpu.memory_space<semaphore_mem>> -> memref<!tpu.dma_semaphore, #tpu.memory_space<semaphore_mem>>
    tpu.wait_dma2 semaphore(%43 : memref<!tpu.dma_semaphore, #tpu.memory_space<semaphore_mem>>) src(%40 : memref<1x32xf32, #tpu.memory_space<any>>) dst(%41 : memref<1x32xf32, #tpu.memory_space<vmem>>)
    %c1_i32_28 = arith.constant 1 : i32
    %c0_i32_29 = arith.constant 0 : i32
    %44 = tpu.memref_slice %arg1[%1, %c0_i32_29] : memref<256x32xf32, #tpu.memory_space<any>> -> memref<1x32xf32, #tpu.memory_space<any>>
    %c1_i32_30 = arith.constant 1 : i32
    %c0_i32_31 = arith.constant 0 : i32
    %45 = tpu.memref_slice %arg12[%c1_i32_30, %c0_i32_31] : memref<8x32xf32, #tpu.memory_space<vmem>> -> memref<1x32xf32, #tpu.memory_space<vmem>>
    %46 = tpu.memref_slice %arg13[%c1_i32_28] : memref<8x!tpu.dma_semaphore, #tpu.memory_space<semaphore_mem>> -> memref<1x!tpu.dma_semaphore, #tpu.memory_space<semaphore_mem>>
    %47 = tpu.memref_squeeze %46 : memref<1x!tpu.dma_semaphore, #tpu.memory_space<semaphore_mem>> -> memref<!tpu.dma_semaphore, #tpu.memory_space<semaphore_mem>>
    tpu.wait_dma2 semaphore(%47 : memref<!tpu.dma_semaphore, #tpu.memory_space<semaphore_mem>>) src(%44 : memref<1x32xf32, #tpu.memory_space<any>>) dst(%45 : memref<1x32xf32, #tpu.memory_space<vmem>>)
    %c2_i32_32 = arith.constant 2 : i32
    %c0_i32_33 = arith.constant 0 : i32
    %48 = tpu.memref_slice %arg1[%2, %c0_i32_33] : memref<256x32xf32, #tpu.memory_space<any>> -> memref<1x32xf32, #tpu.memory_space<any>>
    %c2_i32_34 = arith.constant 2 : i32
    %c0_i32_35 = arith.constant 0 : i32
    %49 = tpu.memref_slice %arg12[%c2_i32_34, %c0_i32_35] : memref<8x32xf32, #tpu.memory_space<vmem>> -> memref<1x32xf32, #tpu.memory_space<vmem>>
    %50 = tpu.memref_slice %arg13[%c2_i32_32] : memref<8x!tpu.dma_semaphore, #tpu.memory_space<semaphore_mem>> -> memref<1x!tpu.dma_semaphore, #tpu.memory_space<semaphore_mem>>
    %51 = tpu.memref_squeeze %50 : memref<1x!tpu.dma_semaphore, #tpu.memory_space<semaphore_mem>> -> memref<!tpu.dma_semaphore, #tpu.memory_space<semaphore_mem>>
    tpu.wait_dma2 semaphore(%51 : memref<!tpu.dma_semaphore, #tpu.memory_space<semaphore_mem>>) src(%48 : memref<1x32xf32, #tpu.memory_space<any>>) dst(%49 : memref<1x32xf32, #tpu.memory_space<vmem>>)
    %c3_i32_36 = arith.constant 3 : i32
    %c0_i32_37 = arith.constant 0 : i32
    %52 = tpu.memref_slice %arg1[%3, %c0_i32_37] : memref<256x32xf32, #tpu.memory_space<any>> -> memref<1x32xf32, #tpu.memory_space<any>>
    %c3_i32_38 = arith.constant 3 : i32
    %c0_i32_39 = arith.constant 0 : i32
    %53 = tpu.memref_slice %arg12[%c3_i32_38, %c0_i32_39] : memref<8x32xf32, #tpu.memory_space<vmem>> -> memref<1x32xf32, #tpu.memory_space<vmem>>
    %54 = tpu.memref_slice %arg13[%c3_i32_36] : memref<8x!tpu.dma_semaphore, #tpu.memory_space<semaphore_mem>> -> memref<1x!tpu.dma_semaphore, #tpu.memory_space<semaphore_mem>>
    %55 = tpu.memref_squeeze %54 : memref<1x!tpu.dma_semaphore, #tpu.memory_space<semaphore_mem>> -> memref<!tpu.dma_semaphore, #tpu.memory_space<semaphore_mem>>
    tpu.wait_dma2 semaphore(%55 : memref<!tpu.dma_semaphore, #tpu.memory_space<semaphore_mem>>) src(%52 : memref<1x32xf32, #tpu.memory_space<any>>) dst(%53 : memref<1x32xf32, #tpu.memory_space<vmem>>)
    %c4_i32_40 = arith.constant 4 : i32
    %c0_i32_41 = arith.constant 0 : i32
    %56 = tpu.memref_slice %arg1[%4, %c0_i32_41] : memref<256x32xf32, #tpu.memory_space<any>> -> memref<1x32xf32, #tpu.memory_space<any>>
    %c4_i32_42 = arith.constant 4 : i32
    %c0_i32_43 = arith.constant 0 : i32
    %57 = tpu.memref_slice %arg12[%c4_i32_42, %c0_i32_43] : memref<8x32xf32, #tpu.memory_space<vmem>> -> memref<1x32xf32, #tpu.memory_space<vmem>>
    %58 = tpu.memref_slice %arg13[%c4_i32_40] : memref<8x!tpu.dma_semaphore, #tpu.memory_space<semaphore_mem>> -> memref<1x!tpu.dma_semaphore, #tpu.memory_space<semaphore_mem>>
    %59 = tpu.memref_squeeze %58 : memref<1x!tpu.dma_semaphore, #tpu.memory_space<semaphore_mem>> -> memref<!tpu.dma_semaphore, #tpu.memory_space<semaphore_mem>>
    tpu.wait_dma2 semaphore(%59 : memref<!tpu.dma_semaphore, #tpu.memory_space<semaphore_mem>>) src(%56 : memref<1x32xf32, #tpu.memory_space<any>>) dst(%57 : memref<1x32xf32, #tpu.memory_space<vmem>>)
    %c5_i32_44 = arith.constant 5 : i32
    %c0_i32_45 = arith.constant 0 : i32
    %60 = tpu.memref_slice %arg1[%5, %c0_i32_45] : memref<256x32xf32, #tpu.memory_space<any>> -> memref<1x32xf32, #tpu.memory_space<any>>
    %c5_i32_46 = arith.constant 5 : i32
    %c0_i32_47 = arith.constant 0 : i32
    %61 = tpu.memref_slice %arg12[%c5_i32_46, %c0_i32_47] : memref<8x32xf32, #tpu.memory_space<vmem>> -> memref<1x32xf32, #tpu.memory_space<vmem>>
    %62 = tpu.memref_slice %arg13[%c5_i32_44] : memref<8x!tpu.dma_semaphore, #tpu.memory_space<semaphore_mem>> -> memref<1x!tpu.dma_semaphore, #tpu.memory_space<semaphore_mem>>
    %63 = tpu.memref_squeeze %62 : memref<1x!tpu.dma_semaphore, #tpu.memory_space<semaphore_mem>> -> memref<!tpu.dma_semaphore, #tpu.memory_space<semaphore_mem>>
    tpu.wait_dma2 semaphore(%63 : memref<!tpu.dma_semaphore, #tpu.memory_space<semaphore_mem>>) src(%60 : memref<1x32xf32, #tpu.memory_space<any>>) dst(%61 : memref<1x32xf32, #tpu.memory_space<vmem>>)
    %c6_i32_48 = arith.constant 6 : i32
    %c0_i32_49 = arith.constant 0 : i32
    %64 = tpu.memref_slice %arg1[%6, %c0_i32_49] : memref<256x32xf32, #tpu.memory_space<any>> -> memref<1x32xf32, #tpu.memory_space<any>>
    %c6_i32_50 = arith.constant 6 : i32
    %c0_i32_51 = arith.constant 0 : i32
    %65 = tpu.memref_slice %arg12[%c6_i32_50, %c0_i32_51] : memref<8x32xf32, #tpu.memory_space<vmem>> -> memref<1x32xf32, #tpu.memory_space<vmem>>
    %66 = tpu.memref_slice %arg13[%c6_i32_48] : memref<8x!tpu.dma_semaphore, #tpu.memory_space<semaphore_mem>> -> memref<1x!tpu.dma_semaphore, #tpu.memory_space<semaphore_mem>>
    %67 = tpu.memref_squeeze %66 : memref<1x!tpu.dma_semaphore, #tpu.memory_space<semaphore_mem>> -> memref<!tpu.dma_semaphore, #tpu.memory_space<semaphore_mem>>
    tpu.wait_dma2 semaphore(%67 : memref<!tpu.dma_semaphore, #tpu.memory_space<semaphore_mem>>) src(%64 : memref<1x32xf32, #tpu.memory_space<any>>) dst(%65 : memref<1x32xf32, #tpu.memory_space<vmem>>)
    %c7_i32_52 = arith.constant 7 : i32
    %c0_i32_53 = arith.constant 0 : i32
    %68 = tpu.memref_slice %arg1[%7, %c0_i32_53] : memref<256x32xf32, #tpu.memory_space<any>> -> memref<1x32xf32, #tpu.memory_space<any>>
    %c7_i32_54 = arith.constant 7 : i32
    %c0_i32_55 = arith.constant 0 : i32
    %69 = tpu.memref_slice %arg12[%c7_i32_54, %c0_i32_55] : memref<8x32xf32, #tpu.memory_space<vmem>> -> memref<1x32xf32, #tpu.memory_space<vmem>>
    %70 = tpu.memref_slice %arg13[%c7_i32_52] : memref<8x!tpu.dma_semaphore, #tpu.memory_space<semaphore_mem>> -> memref<1x!tpu.dma_semaphore, #tpu.memory_space<semaphore_mem>>
    %71 = tpu.memref_squeeze %70 : memref<1x!tpu.dma_semaphore, #tpu.memory_space<semaphore_mem>> -> memref<!tpu.dma_semaphore, #tpu.memory_space<semaphore_mem>>
    tpu.wait_dma2 semaphore(%71 : memref<!tpu.dma_semaphore, #tpu.memory_space<semaphore_mem>>) src(%68 : memref<1x32xf32, #tpu.memory_space<any>>) dst(%69 : memref<1x32xf32, #tpu.memory_space<vmem>>)
    %c0_56 = arith.constant 0 : index
    %c0_57 = arith.constant 0 : index
    %72 = vector.load %arg12[%c0_56, %c0_57] : memref<8x32xf32, #tpu.memory_space<vmem>>, vector<8x32xf32>
    %73 = arith.truncf %72 : vector<8x32xf32> to vector<8x32xbf16>
    %c0_58 = arith.constant 0 : index
    %c0_59 = arith.constant 0 : index
    %74 = vector.load %arg2[%c0_58, %c0_59] : memref<8x128xf32, #tpu.memory_space<vmem>>, vector<8x128xf32>
    %c0_60 = arith.constant 0 : index
    %c0_61 = arith.constant 0 : index
    %75 = vector.load %arg5[%c0_60, %c0_61] : memref<32x384xbf16, #tpu.memory_space<vmem>>, vector<32x384xbf16>
    %cst = arith.constant dense<0.000000e+00> : vector<8x384xf32>
    %76 = tpu.matmul %73, %75, %cst {dimension_numbers = #tpu.dot_dimension_numbers<[1], [0], [0], [1], [0, 0, 1, 1], [], []>} : vector<8x32xbf16>, vector<32x384xbf16>, vector<8x384xf32> -> vector<8x384xf32>
    %77 = arith.truncf %74 : vector<8x128xf32> to vector<8x128xbf16>
    %c0_62 = arith.constant 0 : index
    %c0_63 = arith.constant 0 : index
    %78 = vector.load %arg6[%c0_62, %c0_63] : memref<128x384xbf16, #tpu.memory_space<vmem>>, vector<128x384xbf16>
    %cst_64 = arith.constant dense<0.000000e+00> : vector<8x384xf32>
    %79 = tpu.matmul %77, %78, %cst_64 {dimension_numbers = #tpu.dot_dimension_numbers<[1], [0], [0], [1], [0, 0, 1, 1], [], []>} : vector<8x128xbf16>, vector<128x384xbf16>, vector<8x384xf32> -> vector<8x384xf32>
    %80 = vector.extract_strided_slice %76 {offsets = [0, 0], sizes = [8, 256], strides = [1, 1]} : vector<8x384xf32> to vector<8x256xf32>
    %81 = vector.extract_strided_slice %79 {offsets = [0, 0], sizes = [8, 256], strides = [1, 1]} : vector<8x384xf32> to vector<8x256xf32>
    %82 = arith.addf %80, %81 : vector<8x256xf32>
    %c0_65 = arith.constant 0 : index
    %c0_66 = arith.constant 0 : index
    %83 = vector.load %arg7[%c0_65, %c0_66] : memref<1x256xf32, #tpu.memory_space<vmem>>, vector<1x256xf32>
    %84 = vector.broadcast %83 : vector<1x256xf32> to vector<8x256xf32>
    %85 = arith.addf %82, %84 : vector<8x256xf32>
    %86 = arith.negf %85 : vector<8x256xf32>
    %87 = math.exp %86 : vector<8x256xf32>
    %cst_67 = arith.constant 1.000000e+00 : f32
    %88 = vector.broadcast %cst_67 : f32 to vector<8x256xf32>
    %89 = arith.addf %88, %87 : vector<8x256xf32>
    %90 = arith.divf %88, %89 : vector<8x256xf32>
    %91 = vector.extract_strided_slice %90 {offsets = [0, 0], sizes = [8, 128], strides = [1, 1]} : vector<8x256xf32> to vector<8x128xf32>
    %92 = vector.extract_strided_slice %90 {offsets = [0, 128], sizes = [8, 128], strides = [1, 1]} : vector<8x256xf32> to vector<8x128xf32>
    %93 = vector.extract_strided_slice %76 {offsets = [0, 256], sizes = [8, 128], strides = [1, 1]} : vector<8x384xf32> to vector<8x128xf32>
    %c0_68 = arith.constant 0 : index
    %c0_69 = arith.constant 0 : index
    %94 = vector.load %arg8[%c0_68, %c0_69] : memref<1x128xf32, #tpu.memory_space<vmem>>, vector<1x128xf32>
    %95 = vector.broadcast %94 : vector<1x128xf32> to vector<8x128xf32>
    %96 = arith.addf %93, %95 : vector<8x128xf32>
    %97 = vector.extract_strided_slice %79 {offsets = [0, 256], sizes = [8, 128], strides = [1, 1]} : vector<8x384xf32> to vector<8x128xf32>
    %c0_70 = arith.constant 0 : index
    %c0_71 = arith.constant 0 : index
    %98 = vector.load %arg9[%c0_70, %c0_71] : memref<1x128xf32, #tpu.memory_space<vmem>>, vector<1x128xf32>
    %99 = vector.broadcast %98 : vector<1x128xf32> to vector<8x128xf32>
    %100 = arith.addf %97, %99 : vector<8x128xf32>
    %101 = arith.mulf %91, %100 : vector<8x128xf32>
    %102 = arith.addf %96, %101 : vector<8x128xf32>
    %103 = math.tanh %102 : vector<8x128xf32>
    %cst_72 = arith.constant 1.000000e+00 : f32
    %104 = vector.broadcast %cst_72 : f32 to vector<8x128xf32>
    %105 = arith.subf %104, %92 : vector<8x128xf32>
    %106 = arith.mulf %105, %103 : vector<8x128xf32>
    %107 = arith.mulf %92, %74 : vector<8x128xf32>
    %108 = arith.addf %106, %107 : vector<8x128xf32>
    %c0_73 = arith.constant 0 : index
    %c0_74 = arith.constant 0 : index
    %c0_75 = arith.constant 0 : index
    %109 = vector.load %arg3[%c0_73, %c0_74, %c0_75] : memref<8x8x128xbf16, #tpu.memory_space<vmem>>, vector<8x8x128xbf16>
    %110 = arith.extf %109 : vector<8x8x128xbf16> to vector<8x8x128xf32>
    %111 = vector.shape_cast %108 : vector<8x128xf32> to vector<1x8x128xf32>
    %112 = vector.broadcast %111 : vector<1x8x128xf32> to vector<8x8x128xf32>
    %113 = arith.mulf %110, %112 : vector<8x8x128xf32>
    %cst_76 = arith.constant dense<0.000000e+00> : vector<8x8xf32>
    %114 = vector.multi_reduction <add>, %113, %cst_76 [2] : vector<8x8x128xf32> to vector<8x8xf32>
    %c0_77 = arith.constant 0 : index
    %c0_78 = arith.constant 0 : index
    %115 = vector.load %arg4[%c0_77, %c0_78] : memref<8x8xi32, #tpu.memory_space<vmem>>, vector<8x8xi32>
    %c0_i32_79 = arith.constant 0 : i32
    %116 = vector.broadcast %c0_i32_79 : i32 to vector<8x8xi32>
    %117 = arith.cmpi eq, %115, %116 : vector<8x8xi32>
    %cst_80 = arith.constant -1.000000e+10 : f32
    %118 = vector.broadcast %cst_80 : f32 to vector<8x8xf32>
    %119 = arith.select %117, %118, %114 : vector<8x8xi1>, vector<8x8xf32>
    %cst_81 = arith.constant dense<0xFF800000> : vector<8xf32>
    %120 = vector.multi_reduction <maximumf>, %119, %cst_81 [1] : vector<8x8xf32> to vector<8xf32>
    %121 = vector.shape_cast %120 : vector<8xf32> to vector<8x1xf32>
    %122 = vector.broadcast %121 : vector<8x1xf32> to vector<8x8xf32>
    %123 = arith.subf %119, %122 : vector<8x8xf32>
    %124 = math.exp %123 : vector<8x8xf32>
    %125 = tpu.iota {dimensions = array<i32: 1>} : vector<1x8xi32>
    %c4_i32_82 = arith.constant 4 : i32
    %126 = vector.broadcast %c4_i32_82 : i32 to vector<1x8xi32>
    %127 = arith.cmpi slt, %125, %126 : vector<1x8xi32>
    %128 = arith.extui %127 : vector<1x8xi1> to vector<1x8xi32>
    %129 = arith.sitofp %128 : vector<1x8xi32> to vector<1x8xf32>
    %130 = vector.broadcast %129 : vector<1x8xf32> to vector<8x8xf32>
    %131 = arith.mulf %124, %130 : vector<8x8xf32>
    %cst_83 = arith.constant dense<0.000000e+00> : vector<8xf32>
    %132 = vector.multi_reduction <add>, %131, %cst_83 [1] : vector<8x8xf32> to vector<8xf32>
    %133 = vector.shape_cast %132 : vector<8xf32> to vector<8x1xf32>
    %134 = tpu.reciprocal %133 {approx = true} : vector<8x1xf32> -> vector<8x1xf32>
    %135 = vector.broadcast %134 : vector<8x1xf32> to vector<8x8xf32>
    %136 = arith.mulf %131, %135 : vector<8x8xf32>
    %137 = vector.shape_cast %136 : vector<8x8xf32> to vector<8x8x1xf32>
    %138 = vector.broadcast %137 : vector<8x8x1xf32> to vector<8x8x128xf32>
    %139 = arith.mulf %138, %110 : vector<8x8x128xf32>
    %cst_84 = arith.constant dense<0.000000e+00> : vector<8x128xf32>
    %140 = vector.multi_reduction <add>, %139, %cst_84 [0] : vector<8x8x128xf32> to vector<8x128xf32>
    %c0_85 = arith.constant 0 : index
    %c0_86 = arith.constant 0 : index
    %141 = vector.load %arg10[%c0_85, %c0_86] : memref<8x128xf32, #tpu.memory_space<vmem>>, vector<8x128xf32>
    tpu.vector_store %arg10[%c0_85, %c0_86], %108 {strides = array<i32>} : memref<8x128xf32, #tpu.memory_space<vmem>>, vector<8x128xf32>,
    %c0_87 = arith.constant 0 : index
    %c0_88 = arith.constant 0 : index
    %142 = vector.load %arg11[%c0_87, %c0_88] : memref<8x128xf32, #tpu.memory_space<vmem>>, vector<8x128xf32>
    tpu.vector_store %arg11[%c0_87, %c0_88], %140 {strides = array<i32>} : memref<8x128xf32, #tpu.memory_space<vmem>>, vector<8x128xf32>,
    return
  }
}

</mosaic_0001>

<llo_original>
// kernel: tpu_custom_call.1
$region0: #{tpu_custom_call.1}
  #allocation0 [shape = 'u32[]', space=smem, size = 0x4, offset = 0x4, fixed_abs, tag = 'smem constant byte address 0x4 - core index']
  #allocation1 [shape = 'u32[72,128]{1,0:T(1,128)}', space=vmem, size = 0x9000, scoped, tag = 'internal scratch']
  #allocation2 [shape = 'f32[8,32]{1,0:T(8,128)}', space=vmem, size = 0x1000, scoped, tag = 'scratch operand']
  #allocation3 [shape = 's32[8]{0}', space=sflag, size = 0x20, scoped, tag = 'scratch operand']
  #allocation10 [shape = 's32[]', space=sflag, size = 0x4, offset = 0, fixed_abs, tag = 'sflag constant byte address 0x0 - dummy sync flag']
  #allocation11 [shape = 's32[]', space=sflag, size = 0x4, offset = 0, fixed_abs, tag = 'sflag constant byte address 0x0 - dummy sync flag']
  #allocation12 [shape = 's32[]', space=sflag, size = 0x4, offset = 0, fixed_abs, tag = 'sflag constant byte address 0x0 - dummy sync flag']
  #allocation13 [shape = 's32[]', space=sflag, size = 0x4, offset = 0, fixed_abs, tag = 'sflag constant byte address 0x0 - dummy sync flag']
  #allocation14 [shape = 's32[]', space=sflag, size = 0x4, offset = 0, fixed_abs, tag = 'sflag constant byte address 0x0 - dummy sync flag']
  #allocation15 [shape = 's32[]', space=sflag, size = 0x4, offset = 0, fixed_abs, tag = 'sflag constant byte address 0x0 - dummy sync flag']
  #allocation16 [shape = 's32[]', space=sflag, size = 0x4, offset = 0, fixed_abs, tag = 'sflag constant byte address 0x0 - dummy sync flag']
  #allocation17 [shape = 's32[]', space=sflag, size = 0x4, offset = 0, fixed_abs, tag = 'sflag constant byte address 0x0 - dummy sync flag']
  %s0 = inlined_call_operand.vmem [shape: s32[8], index: 0, kind: input, shape index: {}]
  %s1 = inlined_call_operand.vmem [shape: f32[256,32], index: 1, kind: input, shape index: {}]
  %s2 = inlined_call_operand.vmem [shape: f32[8,128], index: 2, kind: input, shape index: {}]
  %s3 = inlined_call_operand.vmem [shape: bf16[8,8,128], index: 3, kind: input, shape index: {}]
  %s4 = inlined_call_operand.vmem [shape: s32[8,8], index: 4, kind: input, shape index: {}]
  %s5 = inlined_call_operand.vmem [shape: bf16[32,384], index: 5, kind: input, shape index: {}]
  %s6 = inlined_call_operand.vmem [shape: bf16[128,384], index: 6, kind: input, shape index: {}]
  %s7 = inlined_call_operand.vmem [shape: f32[1,256], index: 7, kind: input, shape index: {}]
  %s8 = inlined_call_operand.vmem [shape: f32[1,128], index: 8, kind: input, shape index: {}]
  %s9 = inlined_call_operand.vmem [shape: f32[1,128], index: 9, kind: input, shape index: {}]
  %s10 = inlined_call_operand.hbm [shape: f32[8,128], index: 10, kind: output, shape index: {0}]
  %s11 = inlined_call_operand.hbm [shape: f32[8,128], index: 11, kind: output, shape index: {1}]
  %12 = xla_tuple %s10, %s11
  %s13 = sld [smem:[#allocation0]]
  $region298: #{tpu_custom_call.1} parent=0
    _
  %s15 = ssub.s32 1, %s13
  %s16 = scalar_select 0, %s15, %s13
  $region1: #{tpu_custom_call.1} parent=0
    #allocation4 [shape = 'u8[512]{0}', space=smem, size = 0x200, scoped, tag = 'input window, operand 0, single buffered']
    #allocation5 [shape = 's32[1]{0}', space=sflag, size = 0x4, scoped, tag = 'scoped memory for tpu_custom_call.1']
    #allocation6 [shape = 's32[1]{0}', space=sflag, size = 0x4, scoped, tag = 'scoped memory for tpu_custom_call.1']
    #allocation7 [shape = 'u8[4096]{0}', space=vmem, size = 0x1000, scoped, tag = 'output window, operand 0, single buffered']
    #allocation8 [shape = 'u8[4096]{0}', space=vmem, size = 0x1000, scoped, tag = 'output window, operand 1, single buffered']
    #allocation9 [shape = 's32[1]{0}', space=sflag, size = 0x4, scoped, tag = 'scoped memory for tpu_custom_call.1']
    %17 = vsyncpa [#allocation6], 0
    %18 = vsyncpa [#allocation5], 0
    %19 = vsyncpa [#allocation9], 0
    // Predicated region
    $region2: #{tpu_custom_call.1} parent=1 // pred_check
      _
    $region3: #{tpu_custom_call.1} parent=1 // pred_check_branch
      %21 = sbr.rel (0) target = $region5
    $region4: #{tpu_custom_call.1} parent=1 // pred_region
      %23 = vsyncadd [#allocation6], 0
      %s25 = sshll.u32 %s0, 4
      %s26 = int_to_ptr.vmem [resolvable:$true] %s25
      %28 = dma.vmem_to_smem %s26, 16, [#allocation4], [#allocation6]
    $region5: #{tpu_custom_call.1} parent=1 // pred_fallthru
      _
    // Predicated region
    $region6: #{tpu_custom_call.1} parent=1 // pred_check
      _
    $region7: #{tpu_custom_call.1} parent=1 // pred_check_branch
      %30 = sbr.rel (0) target = $region9
    $region8: #{tpu_custom_call.1} parent=1 // pred_region
      _
    $region9: #{tpu_custom_call.1} parent=1 // pred_fallthru
      _
    // Predicated region
    $region10: #{tpu_custom_call.1} parent=1 // pred_check
      _
    $region11: #{tpu_custom_call.1} parent=1 // pred_check_branch
      %32 = sbr.rel (0) target = $region13
    $region12: #{tpu_custom_call.1} parent=1 // pred_region
      _
    $region13: #{tpu_custom_call.1} parent=1 // pred_fallthru
      _
    // Predicated region
    $region14: #{tpu_custom_call.1} parent=1 // pred_check
      _
    $region15: #{tpu_custom_call.1} parent=1 // pred_check_branch
      %34 = sbr.rel (0) target = $region17
    $region16: #{tpu_custom_call.1} parent=1 // pred_region
      _
    $region17: #{tpu_custom_call.1} parent=1 // pred_fallthru
      _
    // Predicated region
    $region18: #{tpu_custom_call.1} parent=1 // pred_check
      _
    $region19: #{tpu_custom_call.1} parent=1 // pred_check_branch
      %36 = sbr.rel (0) target = $region21
    $region20: #{tpu_custom_call.1} parent=1 // pred_region
      _
    $region21: #{tpu_custom_call.1} parent=1 // pred_fallthru
      _
    // Predicated region
    $region22: #{tpu_custom_call.1} parent=1 // pred_check
      _
    $region23: #{tpu_custom_call.1} parent=1 // pred_check_branch
      %38 = sbr.rel (0) target = $region25
    $region24: #{tpu_custom_call.1} parent=1 // pred_region
      _
    $region25: #{tpu_custom_call.1} parent=1 // pred_fallthru
      _
    // Predicated region
    $region26: #{tpu_custom_call.1} parent=1 // pred_check
      _
    $region27: #{tpu_custom_call.1} parent=1 // pred_check_branch
      %40 = sbr.rel (0) target = $region29
    $region28: #{tpu_custom_call.1} parent=1 // pred_region
      _
    $region29: #{tpu_custom_call.1} parent=1 // pred_fallthru
      _
    // Predicated region
    $region30: #{tpu_custom_call.1} parent=1 // pred_check
      _
    $region31: #{tpu_custom_call.1} parent=1 // pred_check_branch
      %42 = sbr.rel (0) target = $region33
    $region32: #{tpu_custom_call.1} parent=1 // pred_region
      _
    $region33: #{tpu_custom_call.1} parent=1 // pred_fallthru
      _
    // Predicated region
    $region34: #{tpu_custom_call.1} parent=1 // pred_check
      _
    $region35: #{tpu_custom_call.1} parent=1 // pred_check_branch
      %44 = sbr.rel (0) target = $region37
    $region36: #{tpu_custom_call.1} parent=1 // pred_region
      _
    $region37: #{tpu_custom_call.1} parent=1 // pred_fallthru
      _
    // Predicated region
    $region38: #{tpu_custom_call.1} parent=1 // pred_check
      _
    $region39: #{tpu_custom_call.1} parent=1 // pred_check_branch
      %46 = sbr.rel (0) target = $region41
    $region40: #{tpu_custom_call.1} parent=1 // pred_region
      %48 = dma.done [#allocation6], 16
    $region41: #{tpu_custom_call.1} parent=1 // pred_fallthru
      _
    %49 = sfence
    %s51 = sld [smem:[#allocation4]]
    %s52 = sld [smem:[#allocation4 + $0x1]]
    %s53 = sld [smem:[#allocation4 + $0x2]]
    %s54 = sld [smem:[#allocation4 + $0x3]]
    %s55 = sld [smem:[#allocation4 + $0x4]]
    %s56 = sld [smem:[#allocation4 + $0x5]]
    %s57 = sld [smem:[#allocation4 + $0x6]]
    %s58 = sld [smem:[#allocation4 + $0x7]]
    %s59 = scalar_lea.vmem %s1, %s51
    // Predicated region
    $region42: #{tpu_custom_call.1} parent=1 // pred_check
      _
    $region43: #{tpu_custom_call.1} parent=1 // pred_check_branch
      %61 = sbr.rel target = $region45
    $region44: #{tpu_custom_call.1} parent=1 // pred_region
      // Predicated region
      $region57: #{tpu_custom_call.1} parent=44 // pred_check
        _
      $region58: #{tpu_custom_call.1} parent=44 // pred_check_branch
        %77 = sbr.rel (0) target = $region60
      $region59: #{tpu_custom_call.1} parent=44 // pred_region
        %s79 = ssub.s32 2, 1
        loop: start=0, step=1, limit=1
        $region61: #{tpu_custom_call.1} parent=59 // loop_pre_header
          _
        $region62: #{tpu_custom_call.1} parent=59 // loop_header
          %s81 = sphi 0, %s85
          %p82 = scmp.ge.s32.totalorder %s81, 1
          %s86 = sphi %s59, %s59
          %s87 = sphi [#allocation2], [#allocation2]
        $region63: #{tpu_custom_call.1} parent=59 // loop_header_branch
          %84 = sbr.rel (%p82) target = $region67
        $region64: #{tpu_custom_call.1} parent=59 // loop_body
          %v88 = vld [vmem:[%s86] sm:%s79]
          %89 = vst [vmem:[%s87] sm:%s79] %v88
        $region65: #{tpu_custom_call.1} parent=59 // loop_footer
          %s85 = sadd.s32 1, %s81
        $region66: #{tpu_custom_call.1} parent=59 // loop_footer_branch
          %80 = sbr.rel target = $region62
        $region67: #{tpu_custom_call.1} parent=59 // loop_exit
          _
      $region60: #{tpu_custom_call.1} parent=44 // pred_fallthru
        _
    $region45: #{tpu_custom_call.1} parent=1 // pred_fallthru
      _
    // Predicated region
    $region46: #{tpu_custom_call.1} parent=1 // pred_check
      _
    $region47: #{tpu_custom_call.1} parent=1 // pred_check_branch
      %63 = sbr.rel (0) target = $region49
    $region48: #{tpu_custom_call.1} parent=1 // pred_region
      %s65 = ssub.s32 2, 1
      loop: start=0, step=1, limit=1
      $region50: #{tpu_custom_call.1} parent=48 // loop_pre_header
        _
      $region51: #{tpu_custom_call.1} parent=48 // loop_header
        %s67 = sphi 0, %s71
        %p68 = scmp.ge.s32.totalorder %s67, 1
        %s72 = sphi %s59, %s59
        %s73 = sphi [#allocation2], [#allocation2]
      $region52: #{tpu_custom_call.1} parent=48 // loop_header_branch
        %70 = sbr.rel (%p68) target = $region56
      $region53: #{tpu_custom_call.1} parent=48 // loop_body
        %v74 = vld [vmem:[%s72] sm:%s65]
        %75 = vst [vmem:[%s73] sm:%s65] %v74
      $region54: #{tpu_custom_call.1} parent=48 // loop_footer
        %s71 = sadd.s32 1, %s67
      $region55: #{tpu_custom_call.1} parent=48 // loop_footer_branch
        %66 = sbr.rel target = $region51
      $region56: #{tpu_custom_call.1} parent=48 // loop_exit
        _
    $region49: #{tpu_custom_call.1} parent=1 // pred_fallthru
      _
    // Predicated region
    $region68: #{tpu_custom_call.1} parent=1 // pred_check
      _
    $region69: #{tpu_custom_call.1} parent=1 // pred_check_branch
      %92 = sbr.rel (0) target = $region71
    $region70: #{tpu_custom_call.1} parent=1 // pred_region
      %93 = vsyncadd [#allocation3], 16
    $region71: #{tpu_custom_call.1} parent=1 // pred_fallthru
      _
    %s94 = scalar_lea.vmem %s1, %s52
    %s95 = scalar_lea.vmem [#allocation2], 1
    %s96 = scalar_lea.sflag [#allocation3], 1
    // Predicated region
    $region72: #{tpu_custom_call.1} parent=1 // pred_check
      _
    $region73: #{tpu_custom_call.1} parent=1 // pred_check_branch
      %98 = sbr.rel target = $region75
    $region74: #{tpu_custom_call.1} parent=1 // pred_region
      // Predicated region
      $region87: #{tpu_custom_call.1} parent=74 // pred_check
        _
      $region88: #{tpu_custom_call.1} parent=74 // pred_check_branch
        %114 = sbr.rel (0) target = $region90
      $region89: #{tpu_custom_call.1} parent=74 // pred_region
        %s116 = ssub.s32 2, 1
        loop: start=0, step=1, limit=1
        $region91: #{tpu_custom_call.1} parent=89 // loop_pre_header
          _
        $region92: #{tpu_custom_call.1} parent=89 // loop_header
          %s118 = sphi 0, %s122
          %p119 = scmp.ge.s32.totalorder %s118, 1
          %s123 = sphi %s94, %s94
          %s124 = sphi %s95, %s95
        $region93: #{tpu_custom_call.1} parent=89 // loop_header_branch
          %121 = sbr.rel (%p119) target = $region97
        $region94: #{tpu_custom_call.1} parent=89 // loop_body
          %v125 = vld [vmem:[%s123] sm:%s116]
          %126 = vst [vmem:[%s124] sm:%s116] %v125
        $region95: #{tpu_custom_call.1} parent=89 // loop_footer
          %s122 = sadd.s32 1, %s118
        $region96: #{tpu_custom_call.1} parent=89 // loop_footer_branch
          %117 = sbr.rel target = $region92
        $region97: #{tpu_custom_call.1} parent=89 // loop_exit
          _
      $region90: #{tpu_custom_call.1} parent=74 // pred_fallthru
        _
    $region75: #{tpu_custom_call.1} parent=1 // pred_fallthru
      _
    // Predicated region
    $region76: #{tpu_custom_call.1} parent=1 // pred_check
      _
    $region77: #{tpu_custom_call.1} parent=1 // pred_check_branch
      %100 = sbr.rel (0) target = $region79
    $region78: #{tpu_custom_call.1} parent=1 // pred_region
      %s102 = ssub.s32 2, 1
      loop: start=0, step=1, limit=1
      $region80: #{tpu_custom_call.1} parent=78 // loop_pre_header
        _
      $region81: #{tpu_custom_call.1} parent=78 // loop_header
        %s104 = sphi 0, %s108
        %p105 = scmp.ge.s32.totalorder %s104, 1
        %s109 = sphi %s94, %s94
        %s110 = sphi %s95, %s95
      $region82: #{tpu_custom_call.1} parent=78 // loop_header_branch
        %107 = sbr.rel (%p105) target = $region86
      $region83: #{tpu_custom_call.1} parent=78 // loop_body
        %v111 = vld [vmem:[%s109] sm:%s102]
        %112 = vst [vmem:[%s110] sm:%s102] %v111
      $region84: #{tpu_custom_call.1} parent=78 // loop_footer
        %s108 = sadd.s32 1, %s104
      $region85: #{tpu_custom_call.1} parent=78 // loop_footer_branch
        %103 = sbr.rel target = $region81
      $region86: #{tpu_custom_call.1} parent=78 // loop_exit
        _
    $region79: #{tpu_custom_call.1} parent=1 // pred_fallthru
      _
    // Predicated region
    $region98: #{tpu_custom_call.1} parent=1 // pred_check
      _
    $region99: #{tpu_custom_call.1} parent=1 // pred_check_branch
      %129 = sbr.rel (0) target = $region101
    $region100: #{tpu_custom_call.1} parent=1 // pred_region
      %130 = vsyncadd %s96, 16
    $region101: #{tpu_custom_call.1} parent=1 // pred_fallthru
      _
    %s131 = scalar_lea.vmem %s1, %s53
    %s132 = scalar_lea.vmem [#allocation2], 2
    %s133 = scalar_lea.sflag [#allocation3], 2
    // Predicated region
    $region102: #{tpu_custom_call.1} parent=1 // pred_check
      _
    $region103: #{tpu_custom_call.1} parent=1 // pred_check_branch
      %135 = sbr.rel target = $region105
    $region104: #{tpu_custom_call.1} parent=1 // pred_region
      // Predicated region
      $region117: #{tpu_custom_call.1} parent=104 // pred_check
        _
      $region118: #{tpu_custom_call.1} parent=104 // pred_check_branch
        %151 = sbr.rel (0) target = $region120
      $region119: #{tpu_custom_call.1} parent=104 // pred_region
        %s153 = ssub.s32 2, 1
        loop: start=0, step=1, limit=1
        $region121: #{tpu_custom_call.1} parent=119 // loop_pre_header
          _
        $region122: #{tpu_custom_call.1} parent=119 // loop_header
          %s155 = sphi 0, %s159
          %p156 = scmp.ge.s32.totalorder %s155, 1
          %s160 = sphi %s131, %s131
          %s161 = sphi %s132, %s132
        $region123: #{tpu_custom_call.1} parent=119 // loop_header_branch
          %158 = sbr.rel (%p156) target = $region127
        $region124: #{tpu_custom_call.1} parent=119 // loop_body
          %v162 = vld [vmem:[%s160] sm:%s153]
          %163 = vst [vmem:[%s161] sm:%s153] %v162
        $region125: #{tpu_custom_call.1} parent=119 // loop_footer
          %s159 = sadd.s32 1, %s155
        $region126: #{tpu_custom_call.1} parent=119 // loop_footer_branch
          %154 = sbr.rel target = $region122
        $region127: #{tpu_custom_call.1} parent=119 // loop_exit
          _
      $region120: #{tpu_custom_call.1} parent=104 // pred_fallthru
        _
    $region105: #{tpu_custom_call.1} parent=1 // pred_fallthru
      _
    // Predicated region
    $region106: #{tpu_custom_call.1} parent=1 // pred_check
      _
    $region107: #{tpu_custom_call.1} parent=1 // pred_check_branch
      %137 = sbr.rel (0) target = $region109
    $region108: #{tpu_custom_call.1} parent=1 // pred_region
      %s139 = ssub.s32 2, 1
      loop: start=0, step=1, limit=1
      $region110: #{tpu_custom_call.1} parent=108 // loop_pre_header
        _
      $region111: #{tpu_custom_call.1} parent=108 // loop_header
        %s141 = sphi 0, %s145
        %p142 = scmp.ge.s32.totalorder %s141, 1
        %s146 = sphi %s131, %s131
        %s147 = sphi %s132, %s132
      $region112: #{tpu_custom_call.1} parent=108 // loop_header_branch
        %144 = sbr.rel (%p142) target = $region116
      $region113: #{tpu_custom_call.1} parent=108 // loop_body
        %v148 = vld [vmem:[%s146] sm:%s139]
        %149 = vst [vmem:[%s147] sm:%s139] %v148
      $region114: #{tpu_custom_call.1} parent=108 // loop_footer
        %s145 = sadd.s32 1, %s141
      $region115: #{tpu_custom_call.1} parent=108 // loop_footer_branch
        %140 = sbr.rel target = $region111
      $region116: #{tpu_custom_call.1} parent=108 // loop_exit
        _
    $region109: #{tpu_custom_call.1} parent=1 // pred_fallthru
      _
    // Predicated region
    $region128: #{tpu_custom_call.1} parent=1 // pred_check
      _
    $region129: #{tpu_custom_call.1} parent=1 // pred_check_branch
      %166 = sbr.rel (0) target = $region131
    $region130: #{tpu_custom_call.1} parent=1 // pred_region
      %167 = vsyncadd %s133, 16
    $region131: #{tpu_custom_call.1} parent=1 // pred_fallthru
      _
    %s168 = scalar_lea.vmem %s1, %s54
    %s169 = scalar_lea.vmem [#allocation2], 3
    %s170 = scalar_lea.sflag [#allocation3], 3
    // Predicated region
    $region132: #{tpu_custom_call.1} parent=1 // pred_check
      _
    $region133: #{tpu_custom_call.1} parent=1 // pred_check_branch
      %172 = sbr.rel target = $region135
    $region134: #{tpu_custom_call.1} parent=1 // pred_region
      // Predicated region
      $region147: #{tpu_custom_call.1} parent=134 // pred_check
        _
      $region148: #{tpu_custom_call.1} parent=134 // pred_check_branch
        %188 = sbr.rel (0) target = $region150
      $region149: #{tpu_custom_call.1} parent=134 // pred_region
        %s190 = ssub.s32 2, 1
        loop: start=0, step=1, limit=1
        $region151: #{tpu_custom_call.1} parent=149 // loop_pre_header
          _
        $region152: #{tpu_custom_call.1} parent=149 // loop_header
          %s192 = sphi 0, %s196
          %p193 = scmp.ge.s32.totalorder %s192, 1
          %s197 = sphi %s168, %s168
          %s198 = sphi %s169, %s169
        $region153: #{tpu_custom_call.1} parent=149 // loop_header_branch
          %195 = sbr.rel (%p193) target = $region157
        $region154: #{tpu_custom_call.1} parent=149 // loop_body
          %v199 = vld [vmem:[%s197] sm:%s190]
          %200 = vst [vmem:[%s198] sm:%s190] %v199
        $region155: #{tpu_custom_call.1} parent=149 // loop_footer
          %s196 = sadd.s32 1, %s192
        $region156: #{tpu_custom_call.1} parent=149 // loop_footer_branch
          %191 = sbr.rel target = $region152
        $region157: #{tpu_custom_call.1} parent=149 // loop_exit
          _
      $region150: #{tpu_custom_call.1} parent=134 // pred_fallthru
        _
    $region135: #{tpu_custom_call.1} parent=1 // pred_fallthru
      _
    // Predicated region
    $region136: #{tpu_custom_call.1} parent=1 // pred_check
      _
    $region137: #{tpu_custom_call.1} parent=1 // pred_check_branch
      %174 = sbr.rel (0) target = $region139
    $region138: #{tpu_custom_call.1} parent=1 // pred_region
      %s176 = ssub.s32 2, 1
      loop: start=0, step=1, limit=1
      $region140: #{tpu_custom_call.1} parent=138 // loop_pre_header
        _
      $region141: #{tpu_custom_call.1} parent=138 // loop_header
        %s178 = sphi 0, %s182
        %p179 = scmp.ge.s32.totalorder %s178, 1
        %s183 = sphi %s168, %s168
        %s184 = sphi %s169, %s169
      $region142: #{tpu_custom_call.1} parent=138 // loop_header_branch
        %181 = sbr.rel (%p179) target = $region146
      $region143: #{tpu_custom_call.1} parent=138 // loop_body
        %v185 = vld [vmem:[%s183] sm:%s176]
        %186 = vst [vmem:[%s184] sm:%s176] %v185
      $region144: #{tpu_custom_call.1} parent=138 // loop_footer
        %s182 = sadd.s32 1, %s178
      $region145: #{tpu_custom_call.1} parent=138 // loop_footer_branch
        %177 = sbr.rel target = $region141
      $region146: #{tpu_custom_call.1} parent=138 // loop_exit
        _
    $region139: #{tpu_custom_call.1} parent=1 // pred_fallthru
      _
    // Predicated region
    $region158: #{tpu_custom_call.1} parent=1 // pred_check
      _
    $region159: #{tpu_custom_call.1} parent=1 // pred_check_branch
      %203 = sbr.rel (0) target = $region161
    $region160: #{tpu_custom_call.1} parent=1 // pred_region
      %204 = vsyncadd %s170, 16
    $region161: #{tpu_custom_call.1} parent=1 // pred_fallthru
      _
    %s205 = scalar_lea.vmem %s1, %s55
    %s206 = scalar_lea.vmem [#allocation2], 4
    %s207 = scalar_lea.sflag [#allocation3], 4
    // Predicated region
    $region162: #{tpu_custom_call.1} parent=1 // pred_check
      _
    $region163: #{tpu_custom_call.1} parent=1 // pred_check_branch
      %209 = sbr.rel target = $region165
    $region164: #{tpu_custom_call.1} parent=1 // pred_region
      // Predicated region
      $region177: #{tpu_custom_call.1} parent=164 // pred_check
        _
      $region178: #{tpu_custom_call.1} parent=164 // pred_check_branch
        %225 = sbr.rel (0) target = $region180
      $region179: #{tpu_custom_call.1} parent=164 // pred_region
        %s227 = ssub.s32 2, 1
        loop: start=0, step=1, limit=1
        $region181: #{tpu_custom_call.1} parent=179 // loop_pre_header
          _
        $region182: #{tpu_custom_call.1} parent=179 // loop_header
          %s229 = sphi 0, %s233
          %p230 = scmp.ge.s32.totalorder %s229, 1
          %s234 = sphi %s205, %s205
          %s235 = sphi %s206, %s206
        $region183: #{tpu_custom_call.1} parent=179 // loop_header_branch
          %232 = sbr.rel (%p230) target = $region187
        $region184: #{tpu_custom_call.1} parent=179 // loop_body
          %v236 = vld [vmem:[%s234] sm:%s227]
          %237 = vst [vmem:[%s235] sm:%s227] %v236
        $region185: #{tpu_custom_call.1} parent=179 // loop_footer
          %s233 = sadd.s32 1, %s229
        $region186: #{tpu_custom_call.1} parent=179 // loop_footer_branch
          %228 = sbr.rel target = $region182
        $region187: #{tpu_custom_call.1} parent=179 // loop_exit
          _
      $region180: #{tpu_custom_call.1} parent=164 // pred_fallthru
        _
    $region165: #{tpu_custom_call.1} parent=1 // pred_fallthru
      _
    // Predicated region
    $region166: #{tpu_custom_call.1} parent=1 // pred_check
      _
    $region167: #{tpu_custom_call.1} parent=1 // pred_check_branch
      %211 = sbr.rel (0) target = $region169
    $region168: #{tpu_custom_call.1} parent=1 // pred_region
      %s213 = ssub.s32 2, 1
      loop: start=0, step=1, limit=1
      $region170: #{tpu_custom_call.1} parent=168 // loop_pre_header
        _
      $region171: #{tpu_custom_call.1} parent=168 // loop_header
        %s215 = sphi 0, %s219
        %p216 = scmp.ge.s32.totalorder %s215, 1
        %s220 = sphi %s205, %s205
        %s221 = sphi %s206, %s206
      $region172: #{tpu_custom_call.1} parent=168 // loop_header_branch
        %218 = sbr.rel (%p216) target = $region176
      $region173: #{tpu_custom_call.1} parent=168 // loop_body
        %v222 = vld [vmem:[%s220] sm:%s213]
        %223 = vst [vmem:[%s221] sm:%s213] %v222
      $region174: #{tpu_custom_call.1} parent=168 // loop_footer
        %s219 = sadd.s32 1, %s215
      $region175: #{tpu_custom_call.1} parent=168 // loop_footer_branch
        %214 = sbr.rel target = $region171
      $region176: #{tpu_custom_call.1} parent=168 // loop_exit
        _
    $region169: #{tpu_custom_call.1} parent=1 // pred_fallthru
      _
    // Predicated region
    $region188: #{tpu_custom_call.1} parent=1 // pred_check
      _
    $region189: #{tpu_custom_call.1} parent=1 // pred_check_branch
      %240 = sbr.rel (0) target = $region191
    $region190: #{tpu_custom_call.1} parent=1 // pred_region
      %241 = vsyncadd %s207, 16
    $region191: #{tpu_custom_call.1} parent=1 // pred_fallthru
      _
    %s242 = scalar_lea.vmem %s1, %s56
    %s243 = scalar_lea.vmem [#allocation2], 5
    %s244 = scalar_lea.sflag [#allocation3], 5
    // Predicated region
    $region192: #{tpu_custom_call.1} parent=1 // pred_check
      _
    $region193: #{tpu_custom_call.1} parent=1 // pred_check_branch
      %246 = sbr.rel target = $region195
    $region194: #{tpu_custom_call.1} parent=1 // pred_region
      // Predicated region
      $region207: #{tpu_custom_call.1} parent=194 // pred_check
        _
      $region208: #{tpu_custom_call.1} parent=194 // pred_check_branch
        %262 = sbr.rel (0) target = $region210
      $region209: #{tpu_custom_call.1} parent=194 // pred_region
        %s264 = ssub.s32 2, 1
        loop: start=0, step=1, limit=1
        $region211: #{tpu_custom_call.1} parent=209 // loop_pre_header
          _
        $region212: #{tpu_custom_call.1} parent=209 // loop_header
          %s266 = sphi 0, %s270
          %p267 = scmp.ge.s32.totalorder %s266, 1
          %s271 = sphi %s242, %s242
          %s272 = sphi %s243, %s243
        $region213: #{tpu_custom_call.1} parent=209 // loop_header_branch
          %269 = sbr.rel (%p267) target = $region217
        $region214: #{tpu_custom_call.1} parent=209 // loop_body
          %v273 = vld [vmem:[%s271] sm:%s264]
          %274 = vst [vmem:[%s272] sm:%s264] %v273
        $region215: #{tpu_custom_call.1} parent=209 // loop_footer
          %s270 = sadd.s32 1, %s266
        $region216: #{tpu_custom_call.1} parent=209 // loop_footer_branch
          %265 = sbr.rel target = $region212
        $region217: #{tpu_custom_call.1} parent=209 // loop_exit
          _
      $region210: #{tpu_custom_call.1} parent=194 // pred_fallthru
        _
    $region195: #{tpu_custom_call.1} parent=1 // pred_fallthru
      _
    // Predicated region
    $region196: #{tpu_custom_call.1} parent=1 // pred_check
      _
    $region197: #{tpu_custom_call.1} parent=1 // pred_check_branch
      %248 = sbr.rel (0) target = $region199
    $region198: #{tpu_custom_call.1} parent=1 // pred_region
      %s250 = ssub.s32 2, 1
      loop: start=0, step=1, limit=1
      $region200: #{tpu_custom_call.1} parent=198 // loop_pre_header
        _
      $region201: #{tpu_custom_call.1} parent=198 // loop_header
        %s252 = sphi 0, %s256
        %p253 = scmp.ge.s32.totalorder %s252, 1
        %s257 = sphi %s242, %s242
        %s258 = sphi %s243, %s243
      $region202: #{tpu_custom_call.1} parent=198 // loop_header_branch
        %255 = sbr.rel (%p253) target = $region206
      $region203: #{tpu_custom_call.1} parent=198 // loop_body
        %v259 = vld [vmem:[%s257] sm:%s250]
        %260 = vst [vmem:[%s258] sm:%s250] %v259
      $region204: #{tpu_custom_call.1} parent=198 // loop_footer
        %s256 = sadd.s32 1, %s252
      $region205: #{tpu_custom_call.1} parent=198 // loop_footer_branch
        %251 = sbr.rel target = $region201
      $region206: #{tpu_custom_call.1} parent=198 // loop_exit
        _
    $region199: #{tpu_custom_call.1} parent=1 // pred_fallthru
      _
    // Predicated region
    $region218: #{tpu_custom_call.1} parent=1 // pred_check
      _
    $region219: #{tpu_custom_call.1} parent=1 // pred_check_branch
      %277 = sbr.rel (0) target = $region221
    $region220: #{tpu_custom_call.1} parent=1 // pred_region
      %278 = vsyncadd %s244, 16
    $region221: #{tpu_custom_call.1} parent=1 // pred_fallthru
      _
    %s279 = scalar_lea.vmem %s1, %s57
    %s280 = scalar_lea.vmem [#allocation2], 6
    %s281 = scalar_lea.sflag [#allocation3], 6
    // Predicated region
    $region222: #{tpu_custom_call.1} parent=1 // pred_check
      _
    $region223: #{tpu_custom_call.1} parent=1 // pred_check_branch
      %283 = sbr.rel target = $region225
    $region224: #{tpu_custom_call.1} parent=1 // pred_region
      // Predicated region
      $region237: #{tpu_custom_call.1} parent=224 // pred_check
        _
      $region238: #{tpu_custom_call.1} parent=224 // pred_check_branch
        %299 = sbr.rel (0) target = $region240
      $region239: #{tpu_custom_call.1} parent=224 // pred_region
        %s301 = ssub.s32 2, 1
        loop: start=0, step=1, limit=1
        $region241: #{tpu_custom_call.1} parent=239 // loop_pre_header
          _
        $region242: #{tpu_custom_call.1} parent=239 // loop_header
          %s303 = sphi 0, %s307
          %p304 = scmp.ge.s32.totalorder %s303, 1
          %s308 = sphi %s279, %s279
          %s309 = sphi %s280, %s280
        $region243: #{tpu_custom_call.1} parent=239 // loop_header_branch
          %306 = sbr.rel (%p304) target = $region247
        $region244: #{tpu_custom_call.1} parent=239 // loop_body
          %v310 = vld [vmem:[%s308] sm:%s301]
          %311 = vst [vmem:[%s309] sm:%s301] %v310
        $region245: #{tpu_custom_call.1} parent=239 // loop_footer
          %s307 = sadd.s32 1, %s303
        $region246: #{tpu_custom_call.1} parent=239 // loop_footer_branch
          %302 = sbr.rel target = $region242
        $region247: #{tpu_custom_call.1} parent=239 // loop_exit
          _
      $region240: #{tpu_custom_call.1} parent=224 // pred_fallthru
        _
    $region225: #{tpu_custom_call.1} parent=1 // pred_fallthru
      _
    // Predicated region
    $region226: #{tpu_custom_call.1} parent=1 // pred_check
      _
    $region227: #{tpu_custom_call.1} parent=1 // pred_check_branch
      %285 = sbr.rel (0) target = $region229
    $region228: #{tpu_custom_call.1} parent=1 // pred_region
      %s287 = ssub.s32 2, 1
      loop: start=0, step=1, limit=1
      $region230: #{tpu_custom_call.1} parent=228 // loop_pre_header
        _
      $region231: #{tpu_custom_call.1} parent=228 // loop_header
        %s289 = sphi 0, %s293
        %p290 = scmp.ge.s32.totalorder %s289, 1
        %s294 = sphi %s279, %s279
        %s295 = sphi %s280, %s280
      $region232: #{tpu_custom_call.1} parent=228 // loop_header_branch
        %292 = sbr.rel (%p290) target = $region236
      $region233: #{tpu_custom_call.1} parent=228 // loop_body
        %v296 = vld [vmem:[%s294] sm:%s287]
        %297 = vst [vmem:[%s295] sm:%s287] %v296
      $region234: #{tpu_custom_call.1} parent=228 // loop_footer
        %s293 = sadd.s32 1, %s289
      $region235: #{tpu_custom_call.1} parent=228 // loop_footer_branch
        %288 = sbr.rel target = $region231
      $region236: #{tpu_custom_call.1} parent=228 // loop_exit
        _
    $region229: #{tpu_custom_call.1} parent=1 // pred_fallthru
      _
    // Predicated region
    $region248: #{tpu_custom_call.1} parent=1 // pred_check
      _
    $region249: #{tpu_custom_call.1} parent=1 // pred_check_branch
      %314 = sbr.rel (0) target = $region251
    $region250: #{tpu_custom_call.1} parent=1 // pred_region
      %315 = vsyncadd %s281, 16
    $region251: #{tpu_custom_call.1} parent=1 // pred_fallthru
      _
    %s316 = scalar_lea.vmem %s1, %s58
    %s317 = scalar_lea.vmem [#allocation2], 7
    %s318 = scalar_lea.sflag [#allocation3], 7
    // Predicated region
    $region252: #{tpu_custom_call.1} parent=1 // pred_check
      _
    $region253: #{tpu_custom_call.1} parent=1 // pred_check_branch
      %320 = sbr.rel target = $region255
    $region254: #{tpu_custom_call.1} parent=1 // pred_region
      // Predicated region
      $region267: #{tpu_custom_call.1} parent=254 // pred_check
        _
      $region268: #{tpu_custom_call.1} parent=254 // pred_check_branch
        %336 = sbr.rel (0) target = $region270
      $region269: #{tpu_custom_call.1} parent=254 // pred_region
        %s338 = ssub.s32 2, 1
        loop: start=0, step=1, limit=1
        $region271: #{tpu_custom_call.1} parent=269 // loop_pre_header
          _
        $region272: #{tpu_custom_call.1} parent=269 // loop_header
          %s340 = sphi 0, %s344
          %p341 = scmp.ge.s32.totalorder %s340, 1
          %s345 = sphi %s316, %s316
          %s346 = sphi %s317, %s317
        $region273: #{tpu_custom_call.1} parent=269 // loop_header_branch
          %343 = sbr.rel (%p341) target = $region277
        $region274: #{tpu_custom_call.1} parent=269 // loop_body
          %v347 = vld [vmem:[%s345] sm:%s338]
          %348 = vst [vmem:[%s346] sm:%s338] %v347
        $region275: #{tpu_custom_call.1} parent=269 // loop_footer
          %s344 = sadd.s32 1, %s340
        $region276: #{tpu_custom_call.1} parent=269 // loop_footer_branch
          %339 = sbr.rel target = $region272
        $region277: #{tpu_custom_call.1} parent=269 // loop_exit
          _
      $region270: #{tpu_custom_call.1} parent=254 // pred_fallthru
        _
    $region255: #{tpu_custom_call.1} parent=1 // pred_fallthru
      _
    // Predicated region
    $region256: #{tpu_custom_call.1} parent=1 // pred_check
      _
    $region257: #{tpu_custom_call.1} parent=1 // pred_check_branch
      %322 = sbr.rel (0) target = $region259
    $region258: #{tpu_custom_call.1} parent=1 // pred_region
      %s324 = ssub.s32 2, 1
      loop: start=0, step=1, limit=1
      $region260: #{tpu_custom_call.1} parent=258 // loop_pre_header
        _
      $region261: #{tpu_custom_call.1} parent=258 // loop_header
        %s326 = sphi 0, %s330
        %p327 = scmp.ge.s32.totalorder %s326, 1
        %s331 = sphi %s316, %s316
        %s332 = sphi %s317, %s317
      $region262: #{tpu_custom_call.1} parent=258 // loop_header_branch
        %329 = sbr.rel (%p327) target = $region266
      $region263: #{tpu_custom_call.1} parent=258 // loop_body
        %v333 = vld [vmem:[%s331] sm:%s324]
        %334 = vst [vmem:[%s332] sm:%s324] %v333
      $region264: #{tpu_custom_call.1} parent=258 // loop_footer
        %s330 = sadd.s32 1, %s326
      $region265: #{tpu_custom_call.1} parent=258 // loop_footer_branch
        %325 = sbr.rel target = $region261
      $region266: #{tpu_custom_call.1} parent=258 // loop_exit
        _
    $region259: #{tpu_custom_call.1} parent=1 // pred_fallthru
      _
    // Predicated region
    $region278: #{tpu_custom_call.1} parent=1 // pred_check
      _
    $region279: #{tpu_custom_call.1} parent=1 // pred_check_branch
      %351 = sbr.rel (0) target = $region281
    $region280: #{tpu_custom_call.1} parent=1 // pred_region
      %352 = vsyncadd %s318, 16
    $region281: #{tpu_custom_call.1} parent=1 // pred_fallthru
      _
    %s353 = smul.u32 1, 1
    %s354 = sshll.u32 %s353, 4
    %355 = dma.done [#allocation3], %s354
    %s356 = sshll.u32 %s353, 4
    %357 = dma.done %s96, %s356
    %s358 = sshll.u32 %s353, 4
    %359 = dma.done %s133, %s358
    %s360 = sshll.u32 %s353, 4
    %361 = dma.done %s170, %s360
    %s362 = sshll.u32 %s353, 4
    %363 = dma.done %s207, %s362
    %s364 = sshll.u32 %s353, 4
    %365 = dma.done %s244, %s364
    %s366 = sshll.u32 %s353, 4
    %367 = dma.done %s281, %s366
    %s368 = sshll.u32 %s353, 4
    %369 = dma.done %s318, %s368
    %v370 = vld [vmem:[#allocation2] sm:$0xff]
    %v371 = vpack.c.bf16 %v370, %v370
    %v372 = vld [vmem:[%s2] sm:$0xff]
    %v373 = vld [vmem:[%s5] sm:$0xff]
    %v374 = vld [vmem:[%s5 + $0x8] sm:$0xf]
    %v375 = vld [vmem:[%s5 + $0xc] sm:$0xff]
    %v376 = vld [vmem:[%s5 + $0x14] sm:$0xf]
    %v377 = vld [vmem:[%s5 + $0x18] sm:$0xff]
    %v378 = vld [vmem:[%s5 + $0x20] sm:$0xf]
    %v379 = vld [vmem:[%s5 + $0x24] sm:$0xff]
    %v380 = vld [vmem:[%s5 + $0x2c] sm:$0xf]
    %v389 = vunpack.c.l.b16 %v373
    %v390 = vunpack.c.h.b16 %v373
    %v391 = vunpack.c.l.b16 %v374
    %v392 = vunpack.c.l.b16 %v375
    %v393 = vunpack.c.h.b16 %v375
    %v394 = vunpack.c.l.b16 %v376
    %v395 = vunpack.c.l.b16 %v377
    %v396 = vunpack.c.h.b16 %v377
    %v397 = vunpack.c.l.b16 %v378
    %v398 = vunpack.c.l.b16 %v379
    %v399 = vunpack.c.h.b16 %v379
    %v400 = vunpack.c.l.b16 %v380
    %v401 = vpack.c.b16 %v392, %v389
    %v402 = vpack.c.b16 %v393, %v390
    %v403 = vpack.c.b16 %v394, %v391
    %v404 = vpack.c.b16 %v398, %v395
    %v405 = vpack.c.b16 %v399, %v396
    %v406 = vpack.c.b16 %v400, %v397
    %vm413 = vcmask 261120
    %v415 = vsel %vm413, %v371, 0
    %417 = vmatpush.bf16.msra.mxu0 0
    %418 = vmatpush.bf16.msra.mxu0 0
    %419 = vmatpush.bf16.msra.mxu0 0
    %420 = vmatpush.bf16.msra.mxu0 0
    %421 = vmatpush.bf16.msra.mxu0 0
    %422 = vmatpush.bf16.msra.mxu0 0
    %423 = vmatpush.bf16.msra.mxu0 %v404
    %424 = vmatpush.bf16.msra.mxu0 %v401
    %425 = vmatmul.bf16.gmra.mxu0 %v415
    %v426 = vpop.f32.mrf.mxu0
    %v427 = vadd.f32 0.0, %v426
    %v428 = vpop.f32.mrf.mxu0
    %429 = vdwg.mxu0
    %430 = vmatpush.bf16.msra.mxu0 0
    %431 = vmatpush.bf16.msra.mxu0 0
    %432 = vmatpush.bf16.msra.mxu0 0
    %433 = vmatpush.bf16.msra.mxu0 0
    %434 = vmatpush.bf16.msra.mxu0 0
    %435 = vmatpush.bf16.msra.mxu0 0
    %436 = vmatpush.bf16.msra.mxu0 %v405
    %437 = vmatpush.bf16.msra.mxu0 %v402
    %438 = vmatmul.bf16.gmra.mxu0 %v415
    %v439 = vpop.f32.mrf.mxu0
    %v440 = vadd.f32 0.0, %v439
    %v441 = vpop.f32.mrf.mxu0
    %442 = vdwg.mxu0
    %443 = vmatpush.bf16.msra.mxu0 0
    %444 = vmatpush.bf16.msra.mxu0 0
    %445 = vmatpush.bf16.msra.mxu0 0
    %446 = vmatpush.bf16.msra.mxu0 0
    %447 = vmatpush.bf16.msra.mxu0 0
    %448 = vmatpush.bf16.msra.mxu0 0
    %449 = vmatpush.bf16.msra.mxu0 %v406
    %450 = vmatpush.bf16.msra.mxu0 %v403
    %451 = vmatmul.bf16.gmra.mxu0 %v415
    %v452 = vpop.f32.mrf.mxu0
    %v453 = vadd.f32 0.0, %v452
    %v454 = vpop.f32.mrf.mxu0
    %455 = vdwg.mxu0
    %v456 = vpack.c.bf16 %v372, %v372
    %v457 = vld [vmem:[%s6] sm:$0xff]
    %v458 = vld [vmem:[%s6 + $0x8] sm:$0xf]
    %v459 = vld [vmem:[%s6 + $0xc] sm:$0xff]
    %v460 = vld [vmem:[%s6 + $0x14] sm:$0xf]
    %v461 = vld [vmem:[%s6 + $0x18] sm:$0xff]
    %v462 = vld [vmem:[%s6 + $0x20] sm:$0xf]
    %v463 = vld [vmem:[%s6 + $0x24] sm:$0xff]
    %v464 = vld [vmem:[%s6 + $0x2c] sm:$0xf]
    %v465 = vld [vmem:[%s6 + $0x30] sm:$0xff]
    %v466 = vld [vmem:[%s6 + $0x38] sm:$0xf]
    %v467 = vld [vmem:[%s6 + $0x3c] sm:$0xff]
    %v468 = vld [vmem:[%s6 + $0x44] sm:$0xf]
    %v469 = vld [vmem:[%s6 + $0x48] sm:$0xff]
    %v470 = vld [vmem:[%s6 + $0x50] sm:$0xf]
    %v471 = vld [vmem:[%s6 + $0x54] sm:$0xff]
    %v472 = vld [vmem:[%s6 + $0x5c] sm:$0xf]
    %v473 = vld [vmem:[%s6 + $0x60] sm:$0xff]
    %v474 = vld [vmem:[%s6 + $0x68] sm:$0xf]
    %v475 = vld [vmem:[%s6 + $0x6c] sm:$0xff]
    %v476 = vld [vmem:[%s6 + $0x74] sm:$0xf]
    %v477 = vld [vmem:[%s6 + $0x78] sm:$0xff]
    %v478 = vld [vmem:[%s6 + $0x80] sm:$0xf]
    %v479 = vld [vmem:[%s6 + $0x84] sm:$0xff]
    %v480 = vld [vmem:[%s6 + $0x8c] sm:$0xf]
    %v481 = vld [vmem:[%s6 + $0x90] sm:$0xff]
    %v482 = vld [vmem:[%s6 + $0x98] sm:$0xf]
    %v483 = vld [vmem:[%s6 + $0x9c] sm:$0xff]
    %v484 = vld [vmem:[%s6 + $0xa4] sm:$0xf]
    %v485 = vld [vmem:[%s6 + $0xa8] sm:$0xff]
    %v486 = vld [vmem:[%s6 + $0xb0] sm:$0xf]
    %v487 = vld [vmem:[%s6 + $0xb4] sm:$0xff]
    %v488 = vld [vmem:[%s6 + $0xbc] sm:$0xf]
    %v521 = vunpack.c.l.b16 %v457
    %v522 = vunpack.c.h.b16 %v457
    %v523 = vunpack.c.l.b16 %v458
    %v524 = vunpack.c.l.b16 %v459
    %v525 = vunpack.c.h.b16 %v459
    %v526 = vunpack.c.l.b16 %v460
    %v527 = vunpack.c.l.b16 %v461
    %v528 = vunpack.c.h.b16 %v461
    %v529 = vunpack.c.l.b16 %v462
    %v530 = vunpack.c.l.b16 %v463
    %v531 = vunpack.c.h.b16 %v463
    %v532 = vunpack.c.l.b16 %v464
    %v533 = vunpack.c.l.b16 %v465
    %v534 = vunpack.c.h.b16 %v465
    %v535 = vunpack.c.l.b16 %v466
    %v536 = vunpack.c.l.b16 %v467
    %v537 = vunpack.c.h.b16 %v467
    %v538 = vunpack.c.l.b16 %v468
    %v539 = vunpack.c.l.b16 %v469
    %v540 = vunpack.c.h.b16 %v469
    %v541 = vunpack.c.l.b16 %v470
    %v542 = vunpack.c.l.b16 %v471
    %v543 = vunpack.c.h.b16 %v471
    %v544 = vunpack.c.l.b16 %v472
    %v545 = vunpack.c.l.b16 %v473
    %v546 = vunpack.c.h.b16 %v473
    %v547 = vunpack.c.l.b16 %v474
    %v548 = vunpack.c.l.b16 %v475
    %v549 = vunpack.c.h.b16 %v475
    %v550 = vunpack.c.l.b16 %v476
    %v551 = vunpack.c.l.b16 %v477
    %v552 = vunpack.c.h.b16 %v477
    %v553 = vunpack.c.l.b16 %v478
    %v554 = vunpack.c.l.b16 %v479
    %v555 = vunpack.c.h.b16 %v479
    %v556 = vunpack.c.l.b16 %v480
    %v557 = vunpack.c.l.b16 %v481
    %v558 = vunpack.c.h.b16 %v481
    %v559 = vunpack.c.l.b16 %v482
    %v560 = vunpack.c.l.b16 %v483
    %v561 = vunpack.c.h.b16 %v483
    %v562 = vunpack.c.l.b16 %v484
    %v563 = vunpack.c.l.b16 %v485
    %v564 = vunpack.c.h.b16 %v485
    %v565 = vunpack.c.l.b16 %v486
    %v566 = vunpack.c.l.b16 %v487
    %v567 = vunpack.c.h.b16 %v487
    %v568 = vunpack.c.l.b16 %v488
    %v569 = vpack.c.b16 %v524, %v521
    %v570 = vpack.c.b16 %v525, %v522
    %v571 = vpack.c.b16 %v526, %v523
    %v572 = vpack.c.b16 %v530, %v527
    %v573 = vpack.c.b16 %v531, %v528
    %v574 = vpack.c.b16 %v532, %v529
    %v575 = vpack.c.b16 %v536, %v533
    %v576 = vpack.c.b16 %v537, %v534
    %v577 = vpack.c.b16 %v538, %v535
    %v578 = vpack.c.b16 %v542, %v539
    %v579 = vpack.c.b16 %v543, %v540
    %v580 = vpack.c.b16 %v544, %v541
    %v581 = vpack.c.b16 %v548, %v545
    %v582 = vpack.c.b16 %v549, %v546
    %v583 = vpack.c.b16 %v550, %v547
    %v584 = vpack.c.b16 %v554, %v551
    %v585 = vpack.c.b16 %v555, %v552
    %v586 = vpack.c.b16 %v556, %v553
    %v587 = vpack.c.b16 %v560, %v557
    %v588 = vpack.c.b16 %v561, %v558
    %v589 = vpack.c.b16 %v562, %v559
    %v590 = vpack.c.b16 %v566, %v563
    %v591 = vpack.c.b16 %v567, %v564
    %v592 = vpack.c.b16 %v568, %v565
    %617 = vmatpush.bf16.msra.mxu0 %v590
    %618 = vmatpush.bf16.msra.mxu0 %v587
    %619 = vmatpush.bf16.msra.mxu0 %v584
    %620 = vmatpush.bf16.msra.mxu0 %v581
    %621 = vmatpush.bf16.msra.mxu0 %v578
    %622 = vmatpush.bf16.msra.mxu0 %v575
    %623 = vmatpush.bf16.msra.mxu0 %v572
    %624 = vmatpush.bf16.msra.mxu0 %v569
    %625 = vmatmul.bf16.gmra.mxu0 %v456
    %v626 = vpop.f32.mrf.mxu0
    %v627 = vadd.f32 0.0, %v626
    %v628 = vpop.f32.mrf.mxu0
    %629 = vdwg.mxu0
    %630 = vmatpush.bf16.msra.mxu0 %v591
    %631 = vmatpush.bf16.msra.mxu0 %v588
    %632 = vmatpush.bf16.msra.mxu0 %v585
    %633 = vmatpush.bf16.msra.mxu0 %v582
    %634 = vmatpush.bf16.msra.mxu0 %v579
    %635 = vmatpush.bf16.msra.mxu0 %v576
    %636 = vmatpush.bf16.msra.mxu0 %v573
    %637 = vmatpush.bf16.msra.mxu0 %v570
    %638 = vmatmul.bf16.gmra.mxu0 %v456
    %v639 = vpop.f32.mrf.mxu0
    %v640 = vadd.f32 0.0, %v639
    %v641 = vpop.f32.mrf.mxu0
    %642 = vdwg.mxu0
    %643 = vmatpush.bf16.msra.mxu0 %v592
    %644 = vmatpush.bf16.msra.mxu0 %v589
    %645 = vmatpush.bf16.msra.mxu0 %v586
    %646 = vmatpush.bf16.msra.mxu0 %v583
    %647 = vmatpush.bf16.msra.mxu0 %v580
    %648 = vmatpush.bf16.msra.mxu0 %v577
    %649 = vmatpush.bf16.msra.mxu0 %v574
    %650 = vmatpush.bf16.msra.mxu0 %v571
    %651 = vmatmul.bf16.gmra.mxu0 %v456
    %v652 = vpop.f32.mrf.mxu0
    %v653 = vadd.f32 0.0, %v652
    %v654 = vpop.f32.mrf.mxu0
    %655 = vdwg.mxu0
    %v656 = vadd.f32 %v427, %v627
    %v657 = vadd.f32 %v440, %v640
    %v658 = vld [vmem:[%s7] sm:$0x3]
    %v660 = vperm.slane %v658, 0
    %v661 = vperm.slane %v658, 1
    %v664 = vadd.f32 %v656, %v660
    %v665 = vadd.f32 %v657, %v661
    %v666 = vxor.u32 %v664, 2147483648
    %v667 = vxor.u32 %v665, 2147483648
    %v668 = vmul.f32 %v666, 1.442695
    %v669 = vpow.pop %v668
    %v670 = vmul.f32 %v667, 1.442695
    %v671 = vpow.pop %v670
    %v672 = vadd.f32 %v669, 1.0
    %v673 = vadd.f32 %v671, 1.0
    %v674 = vrcp.pop %v672
    %v675 = vmul.f32 %v672, %v674
    %v676 = vsub.f32 1.0, %v675
    %v677 = vmul.f32 %v674, %v676
    %v678 = vadd.f32 %v674, %v677
    %vm679 = vweird.f32 %v672
    %vm680 = vweird.f32 %v674
    %vm681 = vmor %vm679, %vm680
    %v682 = vsel %vm681, %v674, %v678
    %v683 = vand.u32 2147483647, %v672
    %vm684 = vcmp.eq.f32.partialorder %v683, 8.507059e+37
    %v685 = vand.u32 %v672, 2147483648
    %v686 = vor.u32 1.1754944e-38, %v685
    %v687 = vsel %vm684, %v686, %v682
    %v688 = vmul.f32 1.0, %v687
    %v689 = vrcp.pop %v673
    %v690 = vmul.f32 %v673, %v689
    %v691 = vsub.f32 1.0, %v690
    %v692 = vmul.f32 %v689, %v691
    %v693 = vadd.f32 %v689, %v692
    %vm694 = vweird.f32 %v673
    %vm695 = vweird.f32 %v689
    %vm696 = vmor %vm694, %vm695
    %v697 = vsel %vm696, %v689, %v693
    %v698 = vand.u32 2147483647, %v673
    %vm699 = vcmp.eq.f32.partialorder %v698, 8.507059e+37
    %v700 = vand.u32 %v673, 2147483648
    %v701 = vor.u32 1.1754944e-38, %v700
    %v702 = vsel %vm699, %v701, %v697
    %v703 = vmul.f32 1.0, %v702
    %v704 = vld [vmem:[%s8] sm:$0x1]
    %v706 = vperm.slane %v704, 0
    %v708 = vadd.f32 %v453, %v706
    %v709 = vld [vmem:[%s9] sm:$0x1]
    %v711 = vperm.slane %v709, 0
    %v713 = vadd.f32 %v653, %v711
    %v714 = vmul.f32 %v688, %v713
    %v715 = vadd.f32 %v708, %v714
    %v716 = vtanh.pop %v715
    %v717 = vsub.f32 1.0, %v703
    %v718 = vmul.f32 %v717, %v716
    %v719 = vmul.f32 %v703, %v372
    %v720 = vadd.f32 %v718, %v719
    %v721 = vld [vmem:[%s3] sm:$0xf]
    %v722 = vld [vmem:[%s3 + $0x4] sm:$0xf]
    %v723 = vld [vmem:[%s3 + $0x8] sm:$0xf]
    %v724 = vld [vmem:[%s3 + $0xc] sm:$0xf]
    %v725 = vld [vmem:[%s3 + $0x10] sm:$0xf]
    %v726 = vld [vmem:[%s3 + $0x14] sm:$0xf]
    %v727 = vld [vmem:[%s3 + $0x18] sm:$0xf]
    %v728 = vld [vmem:[%s3 + $0x1c] sm:$0xf]
    %v729 = vunpack.c.l.bf16 %v721
    %v730 = vunpack.c.l.bf16 %v722
    %v731 = vunpack.c.l.bf16 %v723
    %v732 = vunpack.c.l.bf16 %v724
    %v733 = vunpack.c.l.bf16 %v725
    %v734 = vunpack.c.l.bf16 %v726
    %v735 = vunpack.c.l.bf16 %v727
    %v736 = vunpack.c.l.bf16 %v728
    %v737 = vmul.f32 %v729, %v720
    %v738 = vmul.f32 %v730, %v720
    %v739 = vmul.f32 %v731, %v720
    %v740 = vmul.f32 %v732, %v720
    %v741 = vmul.f32 %v733, %v720
    %v742 = vmul.f32 %v734, %v720
    %v743 = vmul.f32 %v735, %v720
    %v744 = vmul.f32 %v736, %v720
    %745 = vadd.xlane.f32.xlu0 %v737
    %v746 = vpop.xlane.xlu0 %745
    %747 = vadd.xlane.f32.xlu0 %v738
    %v748 = vpop.xlane.xlu0 %747
    %749 = vadd.xlane.f32.xlu0 %v739
    %v750 = vpop.xlane.xlu0 %749
    %751 = vadd.xlane.f32.xlu0 %v740
    %v752 = vpop.xlane.xlu0 %751
    %753 = vadd.xlane.f32.xlu0 %v741
    %v754 = vpop.xlane.xlu0 %753
    %755 = vadd.xlane.f32.xlu0 %v742
    %v756 = vpop.xlane.xlu0 %755
    %757 = vadd.xlane.f32.xlu0 %v743
    %v758 = vpop.xlane.xlu0 %757
    %759 = vadd.xlane.f32.xlu0 %v744
    %v760 = vpop.xlane.xlu0 %759
    %v761 = vld [vmem:[%s4] sm:$0xff]
    %vm762 = vcmp.eq.s32.totalorder %v761, 0
    %v771 = vlaneseq
    %v772 = vand.u32 %v771, 127
    %v773 = vperm.slane %v746, %v772
    %v774 = vperm.slane %v748, %v772
    %v775 = vperm.slane %v750, %v772
    %v776 = vperm.slane %v752, %v772
    %v777 = vperm.slane %v754, %v772
    %v778 = vperm.slane %v756, %v772
    %v779 = vperm.slane %v758, %v772
    %v780 = vperm.slane %v760, %v772
    %vm781 = vcmask 1041409
    %v782 = vsel %vm781, %v774, %v773
    %vm783 = vcmask 1042434
    %v784 = vsel %vm783, %v775, %v782
    %vm785 = vcmask 1043459
    %v786 = vsel %vm785, %v776, %v784
    %vm787 = vcmask 1044484
    %v788 = vsel %vm787, %v777, %v786
    %vm789 = vcmask 1045509
    %v790 = vsel %vm789, %v778, %v788
    %vm791 = vcmask 1046534
    %v792 = vsel %vm791, %v779, %v790
    %vm793 = vcmask 1047559
    %v794 = vsel %vm793, %v780, %v792
    %v796 = vsel %vm762, -1e+10, %v794
    %vm797 = vcmask 64512
    %v798 = vsel %vm797, %v796, -inf
    %799 = vmax.xlane.f32.xlu0 %v798
    %v800 = vpop.xlane.xlu0 %799
    %v801 = vsub.f32 %v796, %v800
    %v802 = vmul.f32 %v801, 1.442695
    %v803 = vpow.pop %v802
    %vm804 = vcmp.lt.s32.totalorder %v772, 4
    %v805 = vsel %vm804, 1, 0
    %v806 = vcvt.s32.f32 %v805
    %v807 = vmul.f32 %v803, %v806
    %v808 = vsel %vm797, %v807, 0.0
    %809 = vadd.xlane.f32.xlu0 %v808
    %v810 = vpop.xlane.xlu0 %809
    %v811 = vrcp.pop %v810
    %v812 = vmul.f32 %v807, %v811
    %v813 = vperm.slane %v812, 0
    %v814 = vlaneseq
    %v815 = vshrl.u32 %v814, 7
    %817 = vset.pattern.permute.xlu0 %v815
    %818 = vperm.xlu0 %817, %v813
    %v819 = vpop.permute.xlu0 %818
    %v820 = vperm.slane %v812, 1
    %v821 = vlaneseq
    %v822 = vshrl.u32 %v821, 7
    %824 = vset.pattern.permute.xlu0 %v822
    %825 = vperm.xlu0 %824, %v820
    %v826 = vpop.permute.xlu0 %825
    %v827 = vperm.slane %v812, 2
    %v828 = vlaneseq
    %v829 = vshrl.u32 %v828, 7
    %831 = vset.pattern.permute.xlu0 %v829
    %832 = vperm.xlu0 %831, %v827
    %v833 = vpop.permute.xlu0 %832
    %v834 = vperm.slane %v812, 3
    %v835 = vlaneseq
    %v836 = vshrl.u32 %v835, 7
    %838 = vset.pattern.permute.xlu0 %v836
    %839 = vperm.xlu0 %838, %v834
    %v840 = vpop.permute.xlu0 %839
    %v841 = vperm.slane %v812, 4
    %v842 = vlaneseq
    %v843 = vshrl.u32 %v842, 7
    %845 = vset.pattern.permute.xlu0 %v843
    %846 = vperm.xlu0 %845, %v841
    %v847 = vpop.permute.xlu0 %846
    %v848 = vperm.slane %v812, 5
    %v849 = vlaneseq
    %v850 = vshrl.u32 %v849, 7
    %852 = vset.pattern.permute.xlu0 %v850
    %853 = vperm.xlu0 %852, %v848
    %v854 = vpop.permute.xlu0 %853
    %v855 = vperm.slane %v812, 6
    %v856 = vlaneseq
    %v857 = vshrl.u32 %v856, 7
    %859 = vset.pattern.permute.xlu0 %v857
    %860 = vperm.xlu0 %859, %v855
    %v861 = vpop.permute.xlu0 %860
    %v862 = vperm.slane %v812, 7
    %v863 = vlaneseq
    %v864 = vshrl.u32 %v863, 7
    %866 = vset.pattern.permute.xlu0 %v864
    %867 = vperm.xlu0 %866, %v862
    %v868 = vpop.permute.xlu0 %867
    %v869 = vmul.f32 %v819, %v729
    %v870 = vmul.f32 %v826, %v730
    %v871 = vmul.f32 %v833, %v731
    %v872 = vmul.f32 %v840, %v732
    %v873 = vmul.f32 %v847, %v733
    %v874 = vmul.f32 %v854, %v734
    %v875 = vmul.f32 %v861, %v735
    %v876 = vmul.f32 %v868, %v736
    %v877 = vadd.f32 %v869, %v870
    %v878 = vadd.f32 %v877, %v871
    %v879 = vadd.f32 %v878, %v872
    %v880 = vadd.f32 %v879, %v873
    %v881 = vadd.f32 %v880, %v874
    %v882 = vadd.f32 %v881, %v875
    %v883 = vadd.f32 %v882, %v876
    %884 = vst [vmem:[#allocation7] sm:$0xff] %v720
    %885 = vst [vmem:[#allocation8] sm:$0xff] %v883
    // Predicated region
    $region282: #{tpu_custom_call.1} parent=1 // pred_check
      _
    $region283: #{tpu_custom_call.1} parent=1 // pred_check_branch
      %887 = sbr.rel (0) target = $region285
    $region284: #{tpu_custom_call.1} parent=1 // pred_region
      %889 = vsyncadd [#allocation5], 0
      %s891 = sshll.u32 [#allocation7], 4
      %s892 = int_to_ptr.vmem [resolvable:$true] %s891
      %s893 = sshll.u32 %s10, 4
      %s894 = int_to_ptr.hbm [resolvable:$true] %s893
      %896 = dma.vmem_to_hbm [thread:$0]  %s892, 128, %s894, [#allocation5]
    $region285: #{tpu_custom_call.1} parent=1 // pred_fallthru
      _
    // Predicated region
    $region286: #{tpu_custom_call.1} parent=1 // pred_check
      _
    $region287: #{tpu_custom_call.1} parent=1 // pred_check_branch
      %898 = sbr.rel (0) target = $region289
    $region288: #{tpu_custom_call.1} parent=1 // pred_region
      %900 = vsyncadd [#allocation9], 0
      %s902 = sshll.u32 [#allocation8], 4
      %s903 = int_to_ptr.vmem [resolvable:$true] %s902
      %s904 = sshll.u32 %s11, 4
      %s905 = int_to_ptr.hbm [resolvable:$true] %s904
      %907 = dma.vmem_to_hbm [thread:$0]  %s903, 128, %s905, [#allocation9]
    $region289: #{tpu_custom_call.1} parent=1 // pred_fallthru
      _
    // Predicated region
    $region290: #{tpu_custom_call.1} parent=1 // pred_check
      _
    $region291: #{tpu_custom_call.1} parent=1 // pred_check_branch
      %909 = sbr.rel (0) target = $region293
    $region292: #{tpu_custom_call.1} parent=1 // pred_region
      %911 = dma.done [#allocation5], 128
    $region293: #{tpu_custom_call.1} parent=1 // pred_fallthru
      _
    // Predicated region
    $region294: #{tpu_custom_call.1} parent=1 // pred_check
      _
    $region295: #{tpu_custom_call.1} parent=1 // pred_check_branch
      %913 = sbr.rel (0) target = $region297
    $region296: #{tpu_custom_call.1} parent=1 // pred_region
      %915 = dma.done [#allocation9], 128
    $region297: #{tpu_custom_call.1} parent=1 // pred_fallthru
      _
    %916 = vsyncpa [#allocation5], 1
    %917 = vsyncpa [#allocation9], 1
    %918 = vsyncpa [#allocation6], 1
  %919 = vsyncmov [#allocation3]
  %s920 = vpop.sfrf %919
  %p921 = scmp.eq.s32.totalorder %s920, 0
  %p922 = pneg %p921
  %924 = shalt.err (%p922)
  %s925 = scalar_lea.sflag [#allocation3], 1
  %926 = vsyncmov %s925
  %s927 = vpop.sfrf %926
  %p928 = scmp.eq.s32.totalorder %s927, 0
  %p929 = pneg %p928
  %931 = shalt.err (%p929)
  %s932 = scalar_lea.sflag [#allocation3], 2
  %933 = vsyncmov %s932
  %s934 = vpop.sfrf %933
  %p935 = scmp.eq.s32.totalorder %s934, 0
  %p936 = pneg %p935
  %938 = shalt.err (%p936)
  %s939 = scalar_lea.sflag [#allocation3], 3
  %940 = vsyncmov %s939
  %s941 = vpop.sfrf %940
  %p942 = scmp.eq.s32.totalorder %s941, 0
  %p943 = pneg %p942
  %945 = shalt.err (%p943)
  %s946 = scalar_lea.sflag [#allocation3], 4
  %947 = vsyncmov %s946
  %s948 = vpop.sfrf %947
  %p949 = scmp.eq.s32.totalorder %s948, 0
  %p950 = pneg %p949
  %952 = shalt.err (%p950)
  %s953 = scalar_lea.sflag [#allocation3], 5
  %954 = vsyncmov %s953
  %s955 = vpop.sfrf %954
  %p956 = scmp.eq.s32.totalorder %s955, 0
  %p957 = pneg %p956
  %959 = shalt.err (%p957)
  %s960 = scalar_lea.sflag [#allocation3], 6
  %961 = vsyncmov %s960
  %s962 = vpop.sfrf %961
  %p963 = scmp.eq.s32.totalorder %s962, 0
  %p964 = pneg %p963
  %966 = shalt.err (%p964)
  %s967 = scalar_lea.sflag [#allocation3], 7
  %968 = vsyncmov %s967
  %s969 = vpop.sfrf %968
  %p970 = scmp.eq.s32.totalorder %s969, 0
  %p971 = pneg %p970
  %973 = shalt.err (%p971)

</llo_original>
